<compile_context>
chip_gen: v7x
topology: tpu7x:2x2x1
jax: 0.10.0
libtpu: 0.0.40
codegen_flags: <defaults>
</compile_context>

<pallas_src>
import functools

import jax
import jax.numpy as jnp
import numpy as np
from jax.experimental import pallas as pl
from jax.experimental.pallas import tpu as pltpu

EPS = 1e-5


def _patch_slab(xp, KH, KW, Hout, Wout):
    """xp: (Hp, Wp, Cin) -> im2col slab (Hout*Wout, KH*KW*Cin).

    Column index = (kh*KW + kw)*Cin + cin  (must match weight layout below).
    Reshapes only collapse major dims (minor dim Cin kept) -> cheap relayout.
    """
    cols = []
    for kh in range(KH):
        for kw in range(KW):
            xs = xp[kh:kh + Hout, kw:kw + Wout, :]          # (Hout, Wout, Cin)
            cols.append(xs.reshape(Hout * Wout, xs.shape[-1]))
    return jnp.concatenate(cols, axis=1)                     # (HW, K)


def _stats_kernel(xp_ref, w_ref, stat_ref, *, KH, KW, Hout, Wout):
    """Pass 1: conv (single MXU contraction) + per-channel sum / sumsq."""
    n = pl.program_id(0)

    @pl.when(n == 0)
    def _():
        stat_ref[...] = jnp.zeros_like(stat_ref)

    xp = xp_ref[0]                                           # (Hp, Wp, Cin)
    slab = _patch_slab(xp, KH, KW, Hout, Wout)               # (HW, K)
    y = jnp.dot(slab, w_ref[...],
                preferred_element_type=jnp.float32)          # (HW, Cout) f32
    s = jnp.sum(y, axis=0, keepdims=True)                    # (1, Cout)
    q = jnp.sum(y * y, axis=0, keepdims=True)                # (1, Cout)
    stat_ref[...] += jnp.concatenate([s, q], axis=0)         # (2, Cout)


def _apply_kernel(xp_ref, w_ref, scale_ref, shift_ref, o_ref,
                  *, KH, KW, Hout, Wout, pad):
    """Pass 2: conv recompute + BN affine + ReLU + fused channel concat.

    Writes a channel-major (Cout+Cin, H*W) slab: lane-dense, NCHW-flattened.
    """
    xp = xp_ref[0]                                           # (Hp, Wp, Cin)
    slab = _patch_slab(xp, KH, KW, Hout, Wout)               # (HW, K)
    y = jnp.dot(slab, w_ref[...],
                preferred_element_type=jnp.float32)          # (HW, Cout) f32
    y = y * scale_ref[...] + shift_ref[...]                  # BN affine (f32)
    y = jnp.maximum(y, 0.0)                                  # ReLU

    # passthrough x = center of the padded block (already in VMEM)
    xc = xp[pad:pad + Hout, pad:pad + Wout, :]               # (Hout, Wout, Cin)
    xc = xc.reshape(Hout * Wout, xc.shape[-1])               # (HW, Cin)

    yt = jnp.transpose(y).astype(o_ref.dtype)                # (Cout, HW)
    xt = jnp.transpose(xc).astype(o_ref.dtype)               # (Cin,  HW)
    o_ref[0] = jnp.concatenate([yt, xt], axis=0)             # (Cout+Cin, HW)


def res_forward(x_nchw, w_oihw, gamma, beta, pad, *, eps=EPS):
    """Pallas implementation of RES.forward.  Returns NCHW concat([y, x], 1)."""
    N, Cin, H, W = x_nchw.shape
    Cout, _, KH, KW = w_oihw.shape
    Hout = H + 2 * pad - KH + 1
    Wout = W + 2 * pad - KW + 1
    assert (Hout, Wout) == (H, W), "concat([y, x]) requires a 'same' conv"
    HW = Hout * Wout
    K = KH * KW * Cin
    Hp, Wp = H + 2 * pad, W + 2 * pad

    # --- glue: one small fused transpose+pad pass over x, tiny weight reshape
    x_nhwc = jnp.transpose(x_nchw, (0, 2, 3, 1))
    xp = jnp.pad(x_nhwc, ((0, 0), (pad, pad), (pad, pad), (0, 0)))
    # weight rows ordered as (kh*KW + kw)*Cin + cin to match _patch_slab
    w2 = jnp.transpose(w_oihw, (2, 3, 1, 0)).reshape(K, Cout).astype(x_nchw.dtype)

    # ------------- pass 1: conv + streaming per-channel sum / sumsq ----------
    stats = pl.pallas_call(
        functools.partial(_stats_kernel, KH=KH, KW=KW, Hout=Hout, Wout=Wout),
        out_shape=jax.ShapeDtypeStruct((2, Cout), jnp.float32),
        grid=(N,),
        in_specs=[
            pl.BlockSpec((1, Hp, Wp, Cin), lambda n: (n, 0, 0, 0)),
            pl.BlockSpec((K, Cout), lambda n: (0, 0)),
        ],
        out_specs=pl.BlockSpec((2, Cout), lambda n: (0, 0)),
        compiler_params=pltpu.CompilerParams(
            dimension_semantics=("arbitrary",)),   # sequential accumulation
    )(xp, w2)

    cnt = float(N * HW)
    mean = stats[0] / cnt                                     # (Cout,)
    var = jnp.maximum(stats[1] / cnt - mean * mean, 0.0)      # biased batch var
    scale_v = gamma.astype(jnp.float32) * jax.lax.rsqrt(var + eps)
    shift_v = beta.astype(jnp.float32) - mean * scale_v
    scale = scale_v.reshape(1, Cout)
    shift = shift_v.reshape(1, Cout)

    # ---- pass 2: conv recompute + BN affine + ReLU + fused channel concat ---
    out = pl.pallas_call(
        functools.partial(_apply_kernel, KH=KH, KW=KW,
                          Hout=Hout, Wout=Wout, pad=pad),
        out_shape=jax.ShapeDtypeStruct((N, Cout + Cin, HW), x_nchw.dtype),
        grid=(N,),
        in_specs=[
            pl.BlockSpec((1, Hp, Wp, Cin), lambda n: (n, 0, 0, 0)),
            pl.BlockSpec((K, Cout), lambda n: (0, 0)),
            pl.BlockSpec((1, Cout), lambda n: (0, 0)),
            pl.BlockSpec((1, Cout), lambda n: (0, 0)),
        ],
        out_specs=pl.BlockSpec((1, Cout + Cin, HW), lambda n: (n, 0, 0)),
        compiler_params=pltpu.CompilerParams(
            dimension_semantics=("parallel",)),    # per-image independent
    )(xp, w2, scale, shift)

    # (N, Ctot, H*W) -> (N, Ctot, H, W): trailing-dim split, no data movement
    return out.reshape(N, Cout + Cin, H, W)


def res_reference(x_nchw, w_oihw, gamma, beta, pad):
    """Plain-JAX reference for verification."""
    y = jax.lax.conv_general_dilated(
        x_nchw.astype(jnp.float32), w_oihw.astype(jnp.float32),
        window_strides=(1, 1), padding=[(pad, pad), (pad, pad)],
        dimension_numbers=("NCHW", "OIHW", "NCHW"))
    mean = jnp.mean(y, axis=(0, 2, 3), keepdims=True)
    var = jnp.mean((y - mean) ** 2, axis=(0, 2, 3), keepdims=True)
    y = (y - mean) * jax.lax.rsqrt(var + EPS)
    y = y * gamma.reshape(1, -1, 1, 1) + beta.reshape(1, -1, 1, 1)
    y = jnp.maximum(y, 0.0).astype(x_nchw.dtype)
    return jnp.concatenate([y, x_nchw], axis=1)


if __name__ == "__main__":
    # small shapes consistent with the module
    N, in_ch, H, W = 2, 4, 16, 16
    out_ch, k_size, pad = 8, 3, 1

    key = jax.random.PRNGKey(0)
    kx, kw, kg, kb = jax.random.split(key, 4)

    x = jax.random.normal(kx, (N, in_ch, H, W), dtype=jnp.float32)
    # Conv2d weight shape (out_ch, in_ch, kH, kW), no bias
    w = jax.random.normal(kw, (out_ch, in_ch, k_size, k_size),
                          dtype=jnp.float32) * 0.1
    # BatchNorm2d affine parameters (deterministic, non-trivial)
    gamma = 1.0 + 0.1 * jax.random.normal(kg, (out_ch,), dtype=jnp.float32)
    beta = 0.1 * jax.random.normal(kb, (out_ch,), dtype=jnp.float32)

    out = res_forward(x, w, gamma, beta, pad)
    out = jax.block_until_ready(out)

    ref = res_reference(x, w, gamma, beta, pad)
    assert out.shape == (N, out_ch + in_ch, H, W), out.shape
    np.testing.assert_allclose(np.asarray(out), np.asarray(ref),
                               rtol=1e-4, atol=1e-4)

    print("KERNEL_OK")
</pallas_src>

<mosaic_0001>
module attributes {stable_mosaic.version = 11 : i64} {
  func.func @_stats_kernel(%arg0: i32, %arg1: memref<1x18x18x4xf32, #tpu.memory_space<vmem>>, %arg2: memref<36x8xf32, #tpu.memory_space<vmem>>, %arg3: memref<2x8xf32, #tpu.memory_space<vmem>>) attributes {dimension_semantics = [#tpu.dimension_semantics<arbitrary>], iteration_bounds = array<i64: 2>, scalar_prefetch = 0 : i64, scratch_operands = 0 : i64, tpu.core_type = #tpu.core_type<tc>, window_params = [{transform_indices = @transform_0, window_bounds = array<i64: 1, 18, 18, 4>}, {pipeline_mode = #tpu.pipeline_mode<synchronous>, transform_indices = @transform_1, window_bounds = array<i64: 36, 8>}, {pipeline_mode = #tpu.pipeline_mode<synchronous>, transform_indices = @transform_2, window_bounds = array<i64: 2, 8>}]} {
    %c0_i32 = arith.constant 0 : i32
    %0 = arith.cmpi eq, %arg0, %c0_i32 : i32
    %1 = arith.extui %0 : i1 to i32
    %c0_i32_0 = arith.constant 0 : i32
    %2 = arith.cmpi ne, %1, %c0_i32_0 : i32
    scf.if %2 {
      %cst_12 = arith.constant 0.000000e+00 : f32
      %35 = vector.broadcast %cst_12 : f32 to vector<2x8xf32>
      %c0_13 = arith.constant 0 : index
      %c0_14 = arith.constant 0 : index
      %36 = vector.load %arg3[%c0_13, %c0_14] : memref<2x8xf32, #tpu.memory_space<vmem>>, vector<2x8xf32>
      tpu.vector_store %arg3[%c0_13, %c0_14], %35 {strides = array<i32>} : memref<2x8xf32, #tpu.memory_space<vmem>>, vector<2x8xf32>,
    } else {
    }
    %c0 = arith.constant 0 : index
    %c0_1 = arith.constant 0 : index
    %c0_2 = arith.constant 0 : index
    %c0_3 = arith.constant 0 : index
    %3 = vector.load %arg1[%c0, %c0_1, %c0_2, %c0_3] : memref<1x18x18x4xf32, #tpu.memory_space<vmem>>, vector<1x18x18x4xf32>
    %4 = vector.shape_cast %3 : vector<1x18x18x4xf32> to vector<18x18x4xf32>
    %5 = vector.extract_strided_slice %4 {offsets = [0, 0, 0], sizes = [16, 16, 4], strides = [1, 1, 1]} : vector<18x18x4xf32> to vector<16x16x4xf32>
    %6 = vector.shape_cast %5 : vector<16x16x4xf32> to vector<256x4xf32>
    %7 = vector.extract_strided_slice %4 {offsets = [0, 1, 0], sizes = [16, 16, 4], strides = [1, 1, 1]} : vector<18x18x4xf32> to vector<16x16x4xf32>
    %8 = vector.shape_cast %7 : vector<16x16x4xf32> to vector<256x4xf32>
    %9 = vector.extract_strided_slice %4 {offsets = [0, 2, 0], sizes = [16, 16, 4], strides = [1, 1, 1]} : vector<18x18x4xf32> to vector<16x16x4xf32>
    %10 = vector.shape_cast %9 : vector<16x16x4xf32> to vector<256x4xf32>
    %11 = vector.extract_strided_slice %4 {offsets = [1, 0, 0], sizes = [16, 16, 4], strides = [1, 1, 1]} : vector<18x18x4xf32> to vector<16x16x4xf32>
    %12 = vector.shape_cast %11 : vector<16x16x4xf32> to vector<256x4xf32>
    %13 = vector.extract_strided_slice %4 {offsets = [1, 1, 0], sizes = [16, 16, 4], strides = [1, 1, 1]} : vector<18x18x4xf32> to vector<16x16x4xf32>
    %14 = vector.shape_cast %13 : vector<16x16x4xf32> to vector<256x4xf32>
    %15 = vector.extract_strided_slice %4 {offsets = [1, 2, 0], sizes = [16, 16, 4], strides = [1, 1, 1]} : vector<18x18x4xf32> to vector<16x16x4xf32>
    %16 = vector.shape_cast %15 : vector<16x16x4xf32> to vector<256x4xf32>
    %17 = vector.extract_strided_slice %4 {offsets = [2, 0, 0], sizes = [16, 16, 4], strides = [1, 1, 1]} : vector<18x18x4xf32> to vector<16x16x4xf32>
    %18 = vector.shape_cast %17 : vector<16x16x4xf32> to vector<256x4xf32>
    %19 = vector.extract_strided_slice %4 {offsets = [2, 1, 0], sizes = [16, 16, 4], strides = [1, 1, 1]} : vector<18x18x4xf32> to vector<16x16x4xf32>
    %20 = vector.shape_cast %19 : vector<16x16x4xf32> to vector<256x4xf32>
    %21 = vector.extract_strided_slice %4 {offsets = [2, 2, 0], sizes = [16, 16, 4], strides = [1, 1, 1]} : vector<18x18x4xf32> to vector<16x16x4xf32>
    %22 = vector.shape_cast %21 : vector<16x16x4xf32> to vector<256x4xf32>
    %23 = tpu.concatenate %6, %8, %10, %12, %14, %16, %18, %20, %22 in 1 : vector<256x4xf32>, vector<256x4xf32>, vector<256x4xf32>, vector<256x4xf32>, vector<256x4xf32>, vector<256x4xf32>, vector<256x4xf32>, vector<256x4xf32>, vector<256x4xf32> -> vector<256x36xf32>
    %c0_4 = arith.constant 0 : index
    %c0_5 = arith.constant 0 : index
    %24 = vector.load %arg2[%c0_4, %c0_5] : memref<36x8xf32, #tpu.memory_space<vmem>>, vector<36x8xf32>
    %cst = arith.constant dense<0.000000e+00> : vector<256x8xf32>
    %25 = tpu.matmul %23, %24, %cst {dimension_numbers = #tpu.dot_dimension_numbers<[1], [0], [0], [1], [0, 0, 1, 1], [], []>} : vector<256x36xf32>, vector<36x8xf32>, vector<256x8xf32> -> vector<256x8xf32>
    %cst_6 = arith.constant dense<0.000000e+00> : vector<8xf32>
    %26 = vector.multi_reduction <add>, %25, %cst_6 [0] : vector<256x8xf32> to vector<8xf32>
    %27 = vector.shape_cast %26 : vector<8xf32> to vector<1x8xf32>
    %28 = arith.mulf %25, %25 : vector<256x8xf32>
    %cst_7 = arith.constant dense<0.000000e+00> : vector<8xf32>
    %29 = vector.multi_reduction <add>, %28, %cst_7 [0] : vector<256x8xf32> to vector<8xf32>
    %30 = vector.shape_cast %29 : vector<8xf32> to vector<1x8xf32>
    %c0_8 = arith.constant 0 : index
    %c0_9 = arith.constant 0 : index
    %31 = vector.load %arg3[%c0_8, %c0_9] : memref<2x8xf32, #tpu.memory_space<vmem>>, vector<2x8xf32>
    %32 = tpu.concatenate %27, %30 in 0 : vector<1x8xf32>, vector<1x8xf32> -> vector<2x8xf32>
    %33 = arith.addf %31, %32 : vector<2x8xf32>
    %c0_10 = arith.constant 0 : index
    %c0_11 = arith.constant 0 : index
    %34 = vector.load %arg3[%c0_10, %c0_11] : memref<2x8xf32, #tpu.memory_space<vmem>>, vector<2x8xf32>
    tpu.vector_store %arg3[%c0_10, %c0_11], %33 {strides = array<i32>} : memref<2x8xf32, #tpu.memory_space<vmem>>, vector<2x8xf32>,
    return
  }
  func.func @transform_0(%arg0: i32) -> (i32, i32, i32, i32) {
    %c0_i32 = arith.constant 0 : i32
    %c0_i32_0 = arith.constant 0 : i32
    %c0_i32_1 = arith.constant 0 : i32
    %c0_i32_2 = arith.constant 0 : i32
    return %arg0, %c0_i32, %c0_i32_0, %c0_i32_1 : i32, i32, i32, i32
  }
  func.func @transform_1(%arg0: i32) -> (i32, i32) {
    %c0_i32 = arith.constant 0 : i32
    %c0_i32_0 = arith.constant 0 : i32
    %c0_i32_1 = arith.constant 0 : i32
    return %c0_i32, %c0_i32_0 : i32, i32
  }
  func.func @transform_2(%arg0: i32) -> (i32, i32) {
    %c0_i32 = arith.constant 0 : i32
    %c0_i32_0 = arith.constant 0 : i32
    %c0_i32_1 = arith.constant 0 : i32
    return %c0_i32, %c0_i32_0 : i32, i32
  }
}

</mosaic_0001>

<llo_original>
// kernel: tpu_custom_call.1
$region0: #{tpu_custom_call.1}
  #allocation0 [shape = 'u32[]', space=smem, size = 0x4, offset = 0x4, fixed_abs, tag = 'smem constant byte address 0x4 - core index']
  #allocation1 [shape = 'u32[144,128]{1,0:T(1,128)}', space=vmem, size = 0x12000, scoped, tag = 'internal scratch']
  %s0 = inlined_call_operand.vmem [shape: f32[2,18,18,4], index: 0, kind: input, shape index: {}]
  %s1 = inlined_call_operand.vmem [shape: f32[36,8], index: 1, kind: input, shape index: {}]
  %s2 = inlined_call_operand.hbm [shape: f32[2,8], index: 2, kind: output, shape index: {}]
  %s3 = sld [smem:[#allocation0]]
  $region45: #{tpu_custom_call.1} parent=0
    _
  %s5 = ssub.s32 1, %s3
  %s6 = scalar_select 0, %s5, %s3
  $region1: #{tpu_custom_call.1} parent=0
    #allocation2 [shape = 'u8[1024]{0}', space=vmem, size = 0x400, scoped, tag = 'output window, operand 0, single buffered']
    #allocation3 [shape = 's32[2]{0}', space=sflag, size = 0x8, scoped, tag = 'scoped memory for tpu_custom_call.1']
    %7 = vsyncpa [#allocation3], 0
    loop: start=0, step=1, limit=4
    $region2: #{tpu_custom_call.1} parent=1 // loop_pre_header
      _
    $region3: #{tpu_custom_call.1} parent=1 // loop_header
      %s9 = sphi 0, %s13
      %p10 = scmp.ge.s32.totalorder %s9, 4
      %s19 = sphi 0, %s21
      %s22 = sphi 0, %s19
      %s23 = sphi 0, %s22
      %s39 = sphi 0, %s23
      %s43 = sphi 0, %s43
      %s45 = sphi 0, %s43
      %s46 = sphi 0, %s45
      %s60 = sphi 0, %s46
      %s64 = sphi 0, %s64
      %s66 = sphi 0, %s64
      %s67 = sphi 0, %s66
      %s81 = sphi 0, %s67
    $region4: #{tpu_custom_call.1} parent=1 // loop_header_branch
      %12 = sbr.rel (%p10) target = $region8
    $region5: #{tpu_custom_call.1} parent=1 // loop_body
      %s14 = ssub.s32 %s9, 1
      %s15 = ssub.s32 %s9, 2
      %s16 = sadd.s32 %s9, 1
      %s17 = ssub.s32 %s9, %s16
      %p18 = scmp.eq.s32.totalorder %s17, 0
      %s20 = sadd.s32 %s19, 1
      %s21 = scalar_select %p18, %s19, %s20
      %p24 = pneg %p18
      %p25 = scmp.eq.s32.totalorder %s9, 1
      %p26 = por %p24, %p25
      %p27 = scmp.ne.s32.totalorder %s19, %s22
      %p28 = scmp.eq.s32.totalorder %s9, 0
      %p29 = por %p27, %p28
      %p30 = scmp.ne.s32.totalorder %s19, %s22
      %p31 = scmp.eq.s32.totalorder %s14, 1
      %p32 = por %p30, %p31
      %p33 = scmp.ne.s32.totalorder %s22, %s23
      %p34 = scmp.eq.s32.totalorder %s14, 0
      %p35 = por %p33, %p34
      %p36 = scmp.ne.s32.totalorder %s22, %s23
      %p37 = scmp.eq.s32.totalorder %s15, 1
      %p38 = por %p36, %p37
      %p40 = scmp.ne.s32.totalorder %s23, %s39
      %p41 = scmp.eq.s32.totalorder %s15, 0
      %p42 = por %p40, %p41
      %s44 = sadd.s32 %s43, 1
      %p47 = scmp.eq.s32.totalorder %s9, 1
      %p48 = scmp.ne.s32.totalorder %s43, %s45
      %p49 = scmp.eq.s32.totalorder %s9, 0
      %p50 = por %p48, %p49
      %p51 = scmp.ne.s32.totalorder %s43, %s45
      %p52 = scmp.eq.s32.totalorder %s14, 1
      %p53 = por %p51, %p52
      %p54 = scmp.ne.s32.totalorder %s45, %s46
      %p55 = scmp.eq.s32.totalorder %s14, 0
      %p56 = por %p54, %p55
      %p57 = scmp.ne.s32.totalorder %s45, %s46
      %p58 = scmp.eq.s32.totalorder %s15, 1
      %p59 = por %p57, %p58
      %p61 = scmp.ne.s32.totalorder %s46, %s60
      %p62 = scmp.eq.s32.totalorder %s15, 0
      %p63 = por %p61, %p62
      %s65 = sadd.s32 %s64, 1
      %p68 = scmp.eq.s32.totalorder %s9, 1
      %p69 = scmp.ne.s32.totalorder %s64, %s66
      %p70 = scmp.eq.s32.totalorder %s9, 0
      %p71 = por %p69, %p70
      %p72 = scmp.ne.s32.totalorder %s64, %s66
      %p73 = scmp.eq.s32.totalorder %s14, 1
      %p74 = por %p72, %p73
      %p75 = scmp.ne.s32.totalorder %s66, %s67
      %p76 = scmp.eq.s32.totalorder %s14, 0
      %p77 = por %p75, %p76
      %p78 = scmp.ne.s32.totalorder %s66, %s67
      %p79 = scmp.eq.s32.totalorder %s15, 1
      %p80 = por %p78, %p79
      %p82 = scmp.ne.s32.totalorder %s67, %s81
      %p83 = scmp.eq.s32.totalorder %s15, 0
      %p84 = por %p82, %p83
      %p85 = scmp.le.s32.totalorder 1, %s9
      %p86 = scmp.lt.s32.totalorder %s9, 3
      %p87 = pnand %p85, %p86
      %p88 = pneg %p87
      // Predicated region
      $region9: #{tpu_custom_call.1} parent=5 // pred_check
        _
      $region10: #{tpu_custom_call.1} parent=5 // pred_check_branch
        %90 = sbr.rel (%p87) target = $region12
      $region11: #{tpu_custom_call.1} parent=5 // pred_region
        %s91 = ssub.s32 %s9, 1
        // Predicated region
        $region13: #{tpu_custom_call.1} parent=11 // pred_check
          %p92 = pneg %p56
        $region14: #{tpu_custom_call.1} parent=11 // pred_check_branch
          %94 = sbr.rel (%p92) target = $region16
        $region15: #{tpu_custom_call.1} parent=11 // pred_region
          _
        $region16: #{tpu_custom_call.1} parent=11 // pred_fallthru
          _
      $region12: #{tpu_custom_call.1} parent=5 // pred_fallthru
        _
      %p95 = scmp.lt.s32.totalorder %s9, 2
      // Predicated region
      $region17: #{tpu_custom_call.1} parent=5 // pred_check
        %p96 = pneg %p95
      $region18: #{tpu_custom_call.1} parent=5 // pred_check_branch
        %98 = sbr.rel (%p96) target = $region20
      $region19: #{tpu_custom_call.1} parent=5 // pred_region
        // Predicated region
        $region21: #{tpu_custom_call.1} parent=19 // pred_check
          %p99 = pneg %p29
        $region22: #{tpu_custom_call.1} parent=19 // pred_check_branch
          %101 = sbr.rel (%p99) target = $region24
        $region23: #{tpu_custom_call.1} parent=19 // pred_region
          %p102 = scmp.lt.s32.totalorder %s9, 1
          %s103 = scalar_select %p102, %s9, 1
          %s104 = smul.addr %s103, 54
          %s105 = smul.addr %s104, 8
          %s106 = scalar_lea.vmem %s0, %s105
        $region24: #{tpu_custom_call.1} parent=19 // pred_fallthru
          _
      $region20: #{tpu_custom_call.1} parent=5 // pred_fallthru
        _
      %p107 = scmp.le.s32.totalorder 1, %s9
      %p108 = scmp.lt.s32.totalorder %s9, 3
      %p109 = pnand %p107, %p108
      %p110 = pneg %p109
      // Predicated region
      $region25: #{tpu_custom_call.1} parent=5 // pred_check
        _
      $region26: #{tpu_custom_call.1} parent=5 // pred_check_branch
        %112 = sbr.rel (%p109) target = $region28
      $region27: #{tpu_custom_call.1} parent=5 // pred_region
        %s113 = ssub.s32 %s9, 1
        %p114 = scmp.lt.s32.totalorder %s14, 1
        %s115 = scalar_select %p114, %s14, 1
        %s116 = smul.addr %s115, 54
        %s117 = smul.addr %s116, 8
        %s118 = scalar_lea.vmem %s0, %s117
        %p119 = pneg %p35
        %p120 = pneg %p32
        %p121 = pneg %p56
        %p122 = pneg %p53
        %p123 = pneg %p77
        %p124 = pneg %p74
        %p125 = scmp.lt.s32.totalorder %s14, 1
        %s126 = scalar_select %p125, %s14, 1
        %s127 = smul.addr %s126, 54
        %s128 = smul.addr %s127, 8
        %s129 = scalar_lea.vmem %s0, %s128
        %p130 = scmp.eq.s32.totalorder %s14, 0
        // Predicated region
        $region29: #{tpu_custom_call.1} parent=27 // pred_check
          %p131 = pneg %p130
        $region30: #{tpu_custom_call.1} parent=27 // pred_check_branch
          %133 = sbr.rel (%p131) target = $region32
        $region31: #{tpu_custom_call.1} parent=27 // pred_region
          %vm134 = vcmask 58368
          %135 = vst.msk [vmem:[#allocation2] sm:$0x3] %vm134, 0.0
        $region32: #{tpu_custom_call.1} parent=27 // pred_fallthru
          _
        %v136 = vld [vmem:[%s129] sm:$0xff]
        %v137 = vld [vmem:[%s129 + $0x8] sm:$0xff]
        %v138 = vld [vmem:[%s129 + $0x10] sm:$0x3]
        %v139 = vld [vmem:[%s129 + $0x18] sm:$0xff]
        %v140 = vld [vmem:[%s129 + $0x20] sm:$0xff]
        %v141 = vld [vmem:[%s129 + $0x28] sm:$0x3]
        %v142 = vld [vmem:[%s129 + $0x30] sm:$0xff]
        %v143 = vld [vmem:[%s129 + $0x38] sm:$0xff]
        %v144 = vld [vmem:[%s129 + $0x40] sm:$0x3]
        %v145 = vld [vmem:[%s129 + $0x48] sm:$0xff]
        %v146 = vld [vmem:[%s129 + $0x50] sm:$0xff]
        %v147 = vld [vmem:[%s129 + $0x58] sm:$0x3]
        %v148 = vld [vmem:[%s129 + $0x60] sm:$0xff]
        %v149 = vld [vmem:[%s129 + $0x68] sm:$0xff]
        %v150 = vld [vmem:[%s129 + $0x70] sm:$0x3]
        %v151 = vld [vmem:[%s129 + $0x78] sm:$0xff]
        %v152 = vld [vmem:[%s129 + $0x80] sm:$0xff]
        %v153 = vld [vmem:[%s129 + $0x88] sm:$0x3]
        %v154 = vld [vmem:[%s129 + $0x90] sm:$0xff]
        %v155 = vld [vmem:[%s129 + $0x98] sm:$0xff]
        %v156 = vld [vmem:[%s129 + $0xa0] sm:$0x3]
        %v157 = vld [vmem:[%s129 + $0xa8] sm:$0xff]
        %v158 = vld [vmem:[%s129 + $0xb0] sm:$0xff]
        %v159 = vld [vmem:[%s129 + $0xb8] sm:$0x3]
        %v160 = vld [vmem:[%s129 + $0xc0] sm:$0xff]
        %v161 = vld [vmem:[%s129 + $0xc8] sm:$0xff]
        %v162 = vld [vmem:[%s129 + $0xd0] sm:$0x3]
        %v163 = vld [vmem:[%s129 + $0xd8] sm:$0xff]
        %v164 = vld [vmem:[%s129 + $0xe0] sm:$0xff]
        %v165 = vld [vmem:[%s129 + $0xe8] sm:$0x3]
        %v166 = vld [vmem:[%s129 + $0xf0] sm:$0xff]
        %v167 = vld [vmem:[%s129 + $0xf8] sm:$0xff]
        %v168 = vld [vmem:[%s129 + $0x100] sm:$0x3]
        %v169 = vld [vmem:[%s129 + $0x108] sm:$0xff]
        %v170 = vld [vmem:[%s129 + $0x110] sm:$0xff]
        %v171 = vld [vmem:[%s129 + $0x118] sm:$0x3]
        %v172 = vld [vmem:[%s129 + $0x120] sm:$0xff]
        %v173 = vld [vmem:[%s129 + $0x128] sm:$0xff]
        %v174 = vld [vmem:[%s129 + $0x130] sm:$0x3]
        %v175 = vld [vmem:[%s129 + $0x138] sm:$0xff]
        %v176 = vld [vmem:[%s129 + $0x140] sm:$0xff]
        %v177 = vld [vmem:[%s129 + $0x148] sm:$0x3]
        %v178 = vld [vmem:[%s129 + $0x150] sm:$0xff]
        %v179 = vld [vmem:[%s129 + $0x158] sm:$0xff]
        %v180 = vld [vmem:[%s129 + $0x160] sm:$0x3]
        %v181 = vld [vmem:[%s129 + $0x168] sm:$0xff]
        %v182 = vld [vmem:[%s129 + $0x170] sm:$0xff]
        %v183 = vld [vmem:[%s129 + $0x178] sm:$0x3]
        %v184 = vld [vmem:[%s129 + $0x180] sm:$0xff]
        %v185 = vld [vmem:[%s129 + $0x188] sm:$0xff]
        %v186 = vld [vmem:[%s129 + $0x190] sm:$0x3]
        %v187 = vld [vmem:[%s129 + $0x198] sm:$0xff]
        %v188 = vld [vmem:[%s129 + $0x1a0] sm:$0xff]
        %v189 = vld [vmem:[%s129 + $0x1a8] sm:$0x3]
        %vm238 = vcmask 1046528
        %v239 = vrot.slane %v136, 1
        %v240 = vrot.slane %v137, 1
        %v241 = vsel %vm238, %v239, %v240
        %v242 = vrot.slane %v138, 1
        %v243 = vsel %vm238, %v240, %v242
        %v244 = vrot.slane %v139, 1
        %v245 = vrot.slane %v140, 1
        %v246 = vsel %vm238, %v244, %v245
        %v247 = vrot.slane %v141, 1
        %v248 = vsel %vm238, %v245, %v247
        %v249 = vrot.slane %v142, 1
        %v250 = vrot.slane %v143, 1
        %v251 = vsel %vm238, %v249, %v250
        %v252 = vrot.slane %v144, 1
        %v253 = vsel %vm238, %v250, %v252
        %v254 = vrot.slane %v145, 1
        %v255 = vrot.slane %v146, 1
        %v256 = vsel %vm238, %v254, %v255
        %v257 = vrot.slane %v147, 1
        %v258 = vsel %vm238, %v255, %v257
        %v259 = vrot.slane %v148, 1
        %v260 = vrot.slane %v149, 1
        %v261 = vsel %vm238, %v259, %v260
        %v262 = vrot.slane %v150, 1
        %v263 = vsel %vm238, %v260, %v262
        %v264 = vrot.slane %v151, 1
        %v265 = vrot.slane %v152, 1
        %v266 = vsel %vm238, %v264, %v265
        %v267 = vrot.slane %v153, 1
        %v268 = vsel %vm238, %v265, %v267
        %v269 = vrot.slane %v154, 1
        %v270 = vrot.slane %v155, 1
        %v271 = vsel %vm238, %v269, %v270
        %v272 = vrot.slane %v156, 1
        %v273 = vsel %vm238, %v270, %v272
        %v274 = vrot.slane %v157, 1
        %v275 = vrot.slane %v158, 1
        %v276 = vsel %vm238, %v274, %v275
        %v277 = vrot.slane %v159, 1
        %v278 = vsel %vm238, %v275, %v277
        %v279 = vrot.slane %v160, 1
        %v280 = vrot.slane %v161, 1
        %v281 = vsel %vm238, %v279, %v280
        %v282 = vrot.slane %v162, 1
        %v283 = vsel %vm238, %v280, %v282
        %v284 = vrot.slane %v163, 1
        %v285 = vrot.slane %v164, 1
        %v286 = vsel %vm238, %v284, %v285
        %v287 = vrot.slane %v165, 1
        %v288 = vsel %vm238, %v285, %v287
        %v289 = vrot.slane %v166, 1
        %v290 = vrot.slane %v167, 1
        %v291 = vsel %vm238, %v289, %v290
        %v292 = vrot.slane %v168, 1
        %v293 = vsel %vm238, %v290, %v292
        %v294 = vrot.slane %v169, 1
        %v295 = vrot.slane %v170, 1
        %v296 = vsel %vm238, %v294, %v295
        %v297 = vrot.slane %v171, 1
        %v298 = vsel %vm238, %v295, %v297
        %v299 = vrot.slane %v172, 1
        %v300 = vrot.slane %v173, 1
        %v301 = vsel %vm238, %v299, %v300
        %v302 = vrot.slane %v174, 1
        %v303 = vsel %vm238, %v300, %v302
        %v304 = vrot.slane %v175, 1
        %v305 = vrot.slane %v176, 1
        %v306 = vsel %vm238, %v304, %v305
        %v307 = vrot.slane %v177, 1
        %v308 = vsel %vm238, %v305, %v307
        %v309 = vrot.slane %v178, 1
        %v310 = vrot.slane %v179, 1
        %v311 = vsel %vm238, %v309, %v310
        %v312 = vrot.slane %v180, 1
        %v313 = vsel %vm238, %v310, %v312
        %v314 = vrot.slane %v181, 1
        %v315 = vrot.slane %v182, 1
        %v316 = vsel %vm238, %v314, %v315
        %v317 = vrot.slane %v183, 1
        %v318 = vsel %vm238, %v315, %v317
        %vm319 = vcmask 1045504
        %v320 = vrot.slane %v136, 2
        %v321 = vrot.slane %v137, 2
        %v322 = vsel %vm319, %v320, %v321
        %v323 = vrot.slane %v138, 2
        %v324 = vsel %vm319, %v321, %v323
        %v325 = vrot.slane %v139, 2
        %v326 = vrot.slane %v140, 2
        %v327 = vsel %vm319, %v325, %v326
        %v328 = vrot.slane %v141, 2
        %v329 = vsel %vm319, %v326, %v328
        %v330 = vrot.slane %v142, 2
        %v331 = vrot.slane %v143, 2
        %v332 = vsel %vm319, %v330, %v331
        %v333 = vrot.slane %v144, 2
        %v334 = vsel %vm319, %v331, %v333
        %v335 = vrot.slane %v145, 2
        %v336 = vrot.slane %v146, 2
        %v337 = vsel %vm319, %v335, %v336
        %v338 = vrot.slane %v147, 2
        %v339 = vsel %vm319, %v336, %v338
        %v340 = vrot.slane %v148, 2
        %v341 = vrot.slane %v149, 2
        %v342 = vsel %vm319, %v340, %v341
        %v343 = vrot.slane %v150, 2
        %v344 = vsel %vm319, %v341, %v343
        %v345 = vrot.slane %v151, 2
        %v346 = vrot.slane %v152, 2
        %v347 = vsel %vm319, %v345, %v346
        %v348 = vrot.slane %v153, 2
        %v349 = vsel %vm319, %v346, %v348
        %v350 = vrot.slane %v154, 2
        %v351 = vrot.slane %v155, 2
        %v352 = vsel %vm319, %v350, %v351
        %v353 = vrot.slane %v156, 2
        %v354 = vsel %vm319, %v351, %v353
        %v355 = vrot.slane %v157, 2
        %v356 = vrot.slane %v158, 2
        %v357 = vsel %vm319, %v355, %v356
        %v358 = vrot.slane %v159, 2
        %v359 = vsel %vm319, %v356, %v358
        %v360 = vrot.slane %v160, 2
        %v361 = vrot.slane %v161, 2
        %v362 = vsel %vm319, %v360, %v361
        %v363 = vrot.slane %v162, 2
        %v364 = vsel %vm319, %v361, %v363
        %v365 = vrot.slane %v163, 2
        %v366 = vrot.slane %v164, 2
        %v367 = vsel %vm319, %v365, %v366
        %v368 = vrot.slane %v165, 2
        %v369 = vsel %vm319, %v366, %v368
        %v370 = vrot.slane %v166, 2
        %v371 = vrot.slane %v167, 2
        %v372 = vsel %vm319, %v370, %v371
        %v373 = vrot.slane %v168, 2
        %v374 = vsel %vm319, %v371, %v373
        %v375 = vrot.slane %v169, 2
        %v376 = vrot.slane %v170, 2
        %v377 = vsel %vm319, %v375, %v376
        %v378 = vrot.slane %v171, 2
        %v379 = vsel %vm319, %v376, %v378
        %v380 = vrot.slane %v172, 2
        %v381 = vrot.slane %v173, 2
        %v382 = vsel %vm319, %v380, %v381
        %v383 = vrot.slane %v174, 2
        %v384 = vsel %vm319, %v381, %v383
        %v385 = vrot.slane %v175, 2
        %v386 = vrot.slane %v176, 2
        %v387 = vsel %vm319, %v385, %v386
        %v388 = vrot.slane %v177, 2
        %v389 = vsel %vm319, %v386, %v388
        %v390 = vrot.slane %v178, 2
        %v391 = vrot.slane %v179, 2
        %v392 = vsel %vm319, %v390, %v391
        %v393 = vrot.slane %v180, 2
        %v394 = vsel %vm319, %v391, %v393
        %v395 = vrot.slane %v181, 2
        %v396 = vrot.slane %v182, 2
        %v397 = vsel %vm319, %v395, %v396
        %v398 = vrot.slane %v183, 2
        %v399 = vsel %vm319, %v396, %v398
        %v403 = vrot.slane %v184, 1
        %v404 = vrot.slane %v185, 1
        %v405 = vsel %vm238, %v403, %v404
        %v406 = vrot.slane %v186, 1
        %v407 = vsel %vm238, %v404, %v406
        %v408 = vrot.slane %v184, 2
        %v409 = vrot.slane %v185, 2
        %v410 = vsel %vm319, %v408, %v409
        %v411 = vrot.slane %v186, 2
        %v412 = vsel %vm319, %v409, %v411
        %v416 = vrot.slane %v187, 1
        %v417 = vrot.slane %v188, 1
        %v418 = vsel %vm238, %v416, %v417
        %v419 = vrot.slane %v189, 1
        %v420 = vsel %vm238, %v417, %v419
        %v421 = vrot.slane %v187, 2
        %v422 = vrot.slane %v188, 2
        %v423 = vsel %vm319, %v421, %v422
        %v424 = vrot.slane %v189, 2
        %v425 = vsel %vm319, %v422, %v424
        %426 = vrot.lane.b32.xlu0 %v241, 4
        %v427 = vpop.permute.xlu0 %426
        %428 = vrot.lane.b32.xlu0 %v243, 4
        %v429 = vpop.permute.xlu0 %428
        %430 = vrot.lane.b32.xlu0 %v246, 4
        %v431 = vpop.permute.xlu0 %430
        %432 = vrot.lane.b32.xlu0 %v248, 4
        %v433 = vpop.permute.xlu0 %432
        %434 = vrot.lane.b32.xlu0 %v251, 4
        %v435 = vpop.permute.xlu0 %434
        %436 = vrot.lane.b32.xlu0 %v253, 4
        %v437 = vpop.permute.xlu0 %436
        %438 = vrot.lane.b32.xlu0 %v256, 4
        %v439 = vpop.permute.xlu0 %438
        %440 = vrot.lane.b32.xlu0 %v258, 4
        %v441 = vpop.permute.xlu0 %440
        %442 = vrot.lane.b32.xlu0 %v261, 4
        %v443 = vpop.permute.xlu0 %442
        %444 = vrot.lane.b32.xlu0 %v263, 4
        %v445 = vpop.permute.xlu0 %444
        %446 = vrot.lane.b32.xlu0 %v266, 4
        %v447 = vpop.permute.xlu0 %446
        %448 = vrot.lane.b32.xlu0 %v268, 4
        %v449 = vpop.permute.xlu0 %448
        %450 = vrot.lane.b32.xlu0 %v271, 4
        %v451 = vpop.permute.xlu0 %450
        %452 = vrot.lane.b32.xlu0 %v273, 4
        %v453 = vpop.permute.xlu0 %452
        %454 = vrot.lane.b32.xlu0 %v276, 4
        %v455 = vpop.permute.xlu0 %454
        %456 = vrot.lane.b32.xlu0 %v278, 4
        %v457 = vpop.permute.xlu0 %456
        %458 = vrot.lane.b32.xlu0 %v281, 4
        %v459 = vpop.permute.xlu0 %458
        %460 = vrot.lane.b32.xlu0 %v283, 4
        %v461 = vpop.permute.xlu0 %460
        %462 = vrot.lane.b32.xlu0 %v286, 4
        %v463 = vpop.permute.xlu0 %462
        %464 = vrot.lane.b32.xlu0 %v288, 4
        %v465 = vpop.permute.xlu0 %464
        %466 = vrot.lane.b32.xlu0 %v291, 4
        %v467 = vpop.permute.xlu0 %466
        %468 = vrot.lane.b32.xlu0 %v293, 4
        %v469 = vpop.permute.xlu0 %468
        %470 = vrot.lane.b32.xlu0 %v296, 4
        %v471 = vpop.permute.xlu0 %470
        %472 = vrot.lane.b32.xlu0 %v298, 4
        %v473 = vpop.permute.xlu0 %472
        %474 = vrot.lane.b32.xlu0 %v301, 4
        %v475 = vpop.permute.xlu0 %474
        %476 = vrot.lane.b32.xlu0 %v303, 4
        %v477 = vpop.permute.xlu0 %476
        %478 = vrot.lane.b32.xlu0 %v306, 4
        %v479 = vpop.permute.xlu0 %478
        %480 = vrot.lane.b32.xlu0 %v308, 4
        %v481 = vpop.permute.xlu0 %480
        %482 = vrot.lane.b32.xlu0 %v311, 4
        %v483 = vpop.permute.xlu0 %482
        %484 = vrot.lane.b32.xlu0 %v313, 4
        %v485 = vpop.permute.xlu0 %484
        %486 = vrot.lane.b32.xlu0 %v316, 4
        %v487 = vpop.permute.xlu0 %486
        %488 = vrot.lane.b32.xlu0 %v318, 4
        %v489 = vpop.permute.xlu0 %488
        %522 = vrot.lane.b32.xlu0 %v322, 8
        %v523 = vpop.permute.xlu0 %522
        %524 = vrot.lane.b32.xlu0 %v324, 8
        %v525 = vpop.permute.xlu0 %524
        %526 = vrot.lane.b32.xlu0 %v327, 8
        %v527 = vpop.permute.xlu0 %526
        %528 = vrot.lane.b32.xlu0 %v329, 8
        %v529 = vpop.permute.xlu0 %528
        %530 = vrot.lane.b32.xlu0 %v332, 8
        %v531 = vpop.permute.xlu0 %530
        %532 = vrot.lane.b32.xlu0 %v334, 8
        %v533 = vpop.permute.xlu0 %532
        %534 = vrot.lane.b32.xlu0 %v337, 8
        %v535 = vpop.permute.xlu0 %534
        %536 = vrot.lane.b32.xlu0 %v339, 8
        %v537 = vpop.permute.xlu0 %536
        %538 = vrot.lane.b32.xlu0 %v342, 8
        %v539 = vpop.permute.xlu0 %538
        %540 = vrot.lane.b32.xlu0 %v344, 8
        %v541 = vpop.permute.xlu0 %540
        %542 = vrot.lane.b32.xlu0 %v347, 8
        %v543 = vpop.permute.xlu0 %542
        %544 = vrot.lane.b32.xlu0 %v349, 8
        %v545 = vpop.permute.xlu0 %544
        %546 = vrot.lane.b32.xlu0 %v352, 8
        %v547 = vpop.permute.xlu0 %546
        %548 = vrot.lane.b32.xlu0 %v354, 8
        %v549 = vpop.permute.xlu0 %548
        %550 = vrot.lane.b32.xlu0 %v357, 8
        %v551 = vpop.permute.xlu0 %550
        %552 = vrot.lane.b32.xlu0 %v359, 8
        %v553 = vpop.permute.xlu0 %552
        %554 = vrot.lane.b32.xlu0 %v362, 8
        %v555 = vpop.permute.xlu0 %554
        %556 = vrot.lane.b32.xlu0 %v364, 8
        %v557 = vpop.permute.xlu0 %556
        %558 = vrot.lane.b32.xlu0 %v367, 8
        %v559 = vpop.permute.xlu0 %558
        %560 = vrot.lane.b32.xlu0 %v369, 8
        %v561 = vpop.permute.xlu0 %560
        %562 = vrot.lane.b32.xlu0 %v372, 8
        %v563 = vpop.permute.xlu0 %562
        %564 = vrot.lane.b32.xlu0 %v374, 8
        %v565 = vpop.permute.xlu0 %564
        %566 = vrot.lane.b32.xlu0 %v377, 8
        %v567 = vpop.permute.xlu0 %566
        %568 = vrot.lane.b32.xlu0 %v379, 8
        %v569 = vpop.permute.xlu0 %568
        %570 = vrot.lane.b32.xlu0 %v382, 8
        %v571 = vpop.permute.xlu0 %570
        %572 = vrot.lane.b32.xlu0 %v384, 8
        %v573 = vpop.permute.xlu0 %572
        %574 = vrot.lane.b32.xlu0 %v387, 8
        %v575 = vpop.permute.xlu0 %574
        %576 = vrot.lane.b32.xlu0 %v389, 8
        %v577 = vpop.permute.xlu0 %576
        %578 = vrot.lane.b32.xlu0 %v392, 8
        %v579 = vpop.permute.xlu0 %578
        %580 = vrot.lane.b32.xlu0 %v394, 8
        %v581 = vpop.permute.xlu0 %580
        %582 = vrot.lane.b32.xlu0 %v397, 8
        %v583 = vpop.permute.xlu0 %582
        %584 = vrot.lane.b32.xlu0 %v399, 8
        %v585 = vpop.permute.xlu0 %584
        %618 = vrot.lane.b32.xlu0 %v139, 12
        %v619 = vpop.permute.xlu0 %618
        %620 = vrot.lane.b32.xlu0 %v140, 12
        %v621 = vpop.permute.xlu0 %620
        %622 = vrot.lane.b32.xlu0 %v142, 12
        %v623 = vpop.permute.xlu0 %622
        %624 = vrot.lane.b32.xlu0 %v143, 12
        %v625 = vpop.permute.xlu0 %624
        %626 = vrot.lane.b32.xlu0 %v145, 12
        %v627 = vpop.permute.xlu0 %626
        %628 = vrot.lane.b32.xlu0 %v146, 12
        %v629 = vpop.permute.xlu0 %628
        %630 = vrot.lane.b32.xlu0 %v148, 12
        %v631 = vpop.permute.xlu0 %630
        %632 = vrot.lane.b32.xlu0 %v149, 12
        %v633 = vpop.permute.xlu0 %632
        %634 = vrot.lane.b32.xlu0 %v151, 12
        %v635 = vpop.permute.xlu0 %634
        %636 = vrot.lane.b32.xlu0 %v152, 12
        %v637 = vpop.permute.xlu0 %636
        %638 = vrot.lane.b32.xlu0 %v154, 12
        %v639 = vpop.permute.xlu0 %638
        %640 = vrot.lane.b32.xlu0 %v155, 12
        %v641 = vpop.permute.xlu0 %640
        %642 = vrot.lane.b32.xlu0 %v157, 12
        %v643 = vpop.permute.xlu0 %642
        %644 = vrot.lane.b32.xlu0 %v158, 12
        %v645 = vpop.permute.xlu0 %644
        %646 = vrot.lane.b32.xlu0 %v160, 12
        %v647 = vpop.permute.xlu0 %646
        %648 = vrot.lane.b32.xlu0 %v161, 12
        %v649 = vpop.permute.xlu0 %648
        %650 = vrot.lane.b32.xlu0 %v163, 12
        %v651 = vpop.permute.xlu0 %650
        %652 = vrot.lane.b32.xlu0 %v164, 12
        %v653 = vpop.permute.xlu0 %652
        %654 = vrot.lane.b32.xlu0 %v166, 12
        %v655 = vpop.permute.xlu0 %654
        %656 = vrot.lane.b32.xlu0 %v167, 12
        %v657 = vpop.permute.xlu0 %656
        %658 = vrot.lane.b32.xlu0 %v169, 12
        %v659 = vpop.permute.xlu0 %658
        %660 = vrot.lane.b32.xlu0 %v170, 12
        %v661 = vpop.permute.xlu0 %660
        %662 = vrot.lane.b32.xlu0 %v172, 12
        %v663 = vpop.permute.xlu0 %662
        %664 = vrot.lane.b32.xlu0 %v173, 12
        %v665 = vpop.permute.xlu0 %664
        %666 = vrot.lane.b32.xlu0 %v175, 12
        %v667 = vpop.permute.xlu0 %666
        %668 = vrot.lane.b32.xlu0 %v176, 12
        %v669 = vpop.permute.xlu0 %668
        %670 = vrot.lane.b32.xlu0 %v178, 12
        %v671 = vpop.permute.xlu0 %670
        %672 = vrot.lane.b32.xlu0 %v179, 12
        %v673 = vpop.permute.xlu0 %672
        %674 = vrot.lane.b32.xlu0 %v181, 12
        %v675 = vpop.permute.xlu0 %674
        %676 = vrot.lane.b32.xlu0 %v182, 12
        %v677 = vpop.permute.xlu0 %676
        %678 = vrot.lane.b32.xlu0 %v184, 12
        %v679 = vpop.permute.xlu0 %678
        %680 = vrot.lane.b32.xlu0 %v185, 12
        %v681 = vpop.permute.xlu0 %680
        %714 = vrot.lane.b32.xlu0 %v246, 16
        %v715 = vpop.permute.xlu0 %714
        %716 = vrot.lane.b32.xlu0 %v248, 16
        %v717 = vpop.permute.xlu0 %716
        %718 = vrot.lane.b32.xlu0 %v251, 16
        %v719 = vpop.permute.xlu0 %718
        %720 = vrot.lane.b32.xlu0 %v253, 16
        %v721 = vpop.permute.xlu0 %720
        %722 = vrot.lane.b32.xlu0 %v256, 16
        %v723 = vpop.permute.xlu0 %722
        %724 = vrot.lane.b32.xlu0 %v258, 16
        %v725 = vpop.permute.xlu0 %724
        %726 = vrot.lane.b32.xlu0 %v261, 16
        %v727 = vpop.permute.xlu0 %726
        %728 = vrot.lane.b32.xlu0 %v263, 16
        %v729 = vpop.permute.xlu0 %728
        %730 = vrot.lane.b32.xlu0 %v266, 16
        %v731 = vpop.permute.xlu0 %730
        %732 = vrot.lane.b32.xlu0 %v268, 16
        %v733 = vpop.permute.xlu0 %732
        %734 = vrot.lane.b32.xlu0 %v271, 16
        %v735 = vpop.permute.xlu0 %734
        %736 = vrot.lane.b32.xlu0 %v273, 16
        %v737 = vpop.permute.xlu0 %736
        %738 = vrot.lane.b32.xlu0 %v276, 16
        %v739 = vpop.permute.xlu0 %738
        %740 = vrot.lane.b32.xlu0 %v278, 16
        %v741 = vpop.permute.xlu0 %740
        %742 = vrot.lane.b32.xlu0 %v281, 16
        %v743 = vpop.permute.xlu0 %742
        %744 = vrot.lane.b32.xlu0 %v283, 16
        %v745 = vpop.permute.xlu0 %744
        %746 = vrot.lane.b32.xlu0 %v286, 16
        %v747 = vpop.permute.xlu0 %746
        %748 = vrot.lane.b32.xlu0 %v288, 16
        %v749 = vpop.permute.xlu0 %748
        %750 = vrot.lane.b32.xlu0 %v291, 16
        %v751 = vpop.permute.xlu0 %750
        %752 = vrot.lane.b32.xlu0 %v293, 16
        %v753 = vpop.permute.xlu0 %752
        %754 = vrot.lane.b32.xlu0 %v296, 16
        %v755 = vpop.permute.xlu0 %754
        %756 = vrot.lane.b32.xlu0 %v298, 16
        %v757 = vpop.permute.xlu0 %756
        %758 = vrot.lane.b32.xlu0 %v301, 16
        %v759 = vpop.permute.xlu0 %758
        %760 = vrot.lane.b32.xlu0 %v303, 16
        %v761 = vpop.permute.xlu0 %760
        %762 = vrot.lane.b32.xlu0 %v306, 16
        %v763 = vpop.permute.xlu0 %762
        %764 = vrot.lane.b32.xlu0 %v308, 16
        %v765 = vpop.permute.xlu0 %764
        %766 = vrot.lane.b32.xlu0 %v311, 16
        %v767 = vpop.permute.xlu0 %766
        %768 = vrot.lane.b32.xlu0 %v313, 16
        %v769 = vpop.permute.xlu0 %768
        %770 = vrot.lane.b32.xlu0 %v316, 16
        %v771 = vpop.permute.xlu0 %770
        %772 = vrot.lane.b32.xlu0 %v318, 16
        %v773 = vpop.permute.xlu0 %772
        %774 = vrot.lane.b32.xlu0 %v405, 16
        %v775 = vpop.permute.xlu0 %774
        %776 = vrot.lane.b32.xlu0 %v407, 16
        %v777 = vpop.permute.xlu0 %776
        %810 = vrot.lane.b32.xlu0 %v327, 20
        %v811 = vpop.permute.xlu0 %810
        %812 = vrot.lane.b32.xlu0 %v329, 20
        %v813 = vpop.permute.xlu0 %812
        %814 = vrot.lane.b32.xlu0 %v332, 20
        %v815 = vpop.permute.xlu0 %814
        %816 = vrot.lane.b32.xlu0 %v334, 20
        %v817 = vpop.permute.xlu0 %816
        %818 = vrot.lane.b32.xlu0 %v337, 20
        %v819 = vpop.permute.xlu0 %818
        %820 = vrot.lane.b32.xlu0 %v339, 20
        %v821 = vpop.permute.xlu0 %820
        %822 = vrot.lane.b32.xlu0 %v342, 20
        %v823 = vpop.permute.xlu0 %822
        %824 = vrot.lane.b32.xlu0 %v344, 20
        %v825 = vpop.permute.xlu0 %824
        %826 = vrot.lane.b32.xlu0 %v347, 20
        %v827 = vpop.permute.xlu0 %826
        %828 = vrot.lane.b32.xlu0 %v349, 20
        %v829 = vpop.permute.xlu0 %828
        %830 = vrot.lane.b32.xlu0 %v352, 20
        %v831 = vpop.permute.xlu0 %830
        %832 = vrot.lane.b32.xlu0 %v354, 20
        %v833 = vpop.permute.xlu0 %832
        %834 = vrot.lane.b32.xlu0 %v357, 20
        %v835 = vpop.permute.xlu0 %834
        %836 = vrot.lane.b32.xlu0 %v359, 20
        %v837 = vpop.permute.xlu0 %836
        %838 = vrot.lane.b32.xlu0 %v362, 20
        %v839 = vpop.permute.xlu0 %838
        %840 = vrot.lane.b32.xlu0 %v364, 20
        %v841 = vpop.permute.xlu0 %840
        %842 = vrot.lane.b32.xlu0 %v367, 20
        %v843 = vpop.permute.xlu0 %842
        %844 = vrot.lane.b32.xlu0 %v369, 20
        %v845 = vpop.permute.xlu0 %844
        %846 = vrot.lane.b32.xlu0 %v372, 20
        %v847 = vpop.permute.xlu0 %846
        %848 = vrot.lane.b32.xlu0 %v374, 20
        %v849 = vpop.permute.xlu0 %848
        %850 = vrot.lane.b32.xlu0 %v377, 20
        %v851 = vpop.permute.xlu0 %850
        %852 = vrot.lane.b32.xlu0 %v379, 20
        %v853 = vpop.permute.xlu0 %852
        %854 = vrot.lane.b32.xlu0 %v382, 20
        %v855 = vpop.permute.xlu0 %854
        %856 = vrot.lane.b32.xlu0 %v384, 20
        %v857 = vpop.permute.xlu0 %856
        %858 = vrot.lane.b32.xlu0 %v387, 20
        %v859 = vpop.permute.xlu0 %858
        %860 = vrot.lane.b32.xlu0 %v389, 20
        %v861 = vpop.permute.xlu0 %860
        %862 = vrot.lane.b32.xlu0 %v392, 20
        %v863 = vpop.permute.xlu0 %862
        %864 = vrot.lane.b32.xlu0 %v394, 20
        %v865 = vpop.permute.xlu0 %864
        %866 = vrot.lane.b32.xlu0 %v397, 20
        %v867 = vpop.permute.xlu0 %866
        %868 = vrot.lane.b32.xlu0 %v399, 20
        %v869 = vpop.permute.xlu0 %868
        %870 = vrot.lane.b32.xlu0 %v410, 20
        %v871 = vpop.permute.xlu0 %870
        %872 = vrot.lane.b32.xlu0 %v412, 20
        %v873 = vpop.permute.xlu0 %872
        %906 = vrot.lane.b32.xlu0 %v142, 24
        %v907 = vpop.permute.xlu0 %906
        %908 = vrot.lane.b32.xlu0 %v143, 24
        %v909 = vpop.permute.xlu0 %908
        %910 = vrot.lane.b32.xlu0 %v145, 24
        %v911 = vpop.permute.xlu0 %910
        %912 = vrot.lane.b32.xlu0 %v146, 24
        %v913 = vpop.permute.xlu0 %912
        %914 = vrot.lane.b32.xlu0 %v148, 24
        %v915 = vpop.permute.xlu0 %914
        %916 = vrot.lane.b32.xlu0 %v149, 24
        %v917 = vpop.permute.xlu0 %916
        %918 = vrot.lane.b32.xlu0 %v151, 24
        %v919 = vpop.permute.xlu0 %918
        %920 = vrot.lane.b32.xlu0 %v152, 24
        %v921 = vpop.permute.xlu0 %920
        %922 = vrot.lane.b32.xlu0 %v154, 24
        %v923 = vpop.permute.xlu0 %922
        %924 = vrot.lane.b32.xlu0 %v155, 24
        %v925 = vpop.permute.xlu0 %924
        %926 = vrot.lane.b32.xlu0 %v157, 24
        %v927 = vpop.permute.xlu0 %926
        %928 = vrot.lane.b32.xlu0 %v158, 24
        %v929 = vpop.permute.xlu0 %928
        %930 = vrot.lane.b32.xlu0 %v160, 24
        %v931 = vpop.permute.xlu0 %930
        %932 = vrot.lane.b32.xlu0 %v161, 24
        %v933 = vpop.permute.xlu0 %932
        %934 = vrot.lane.b32.xlu0 %v163, 24
        %v935 = vpop.permute.xlu0 %934
        %936 = vrot.lane.b32.xlu0 %v164, 24
        %v937 = vpop.permute.xlu0 %936
        %938 = vrot.lane.b32.xlu0 %v166, 24
        %v939 = vpop.permute.xlu0 %938
        %940 = vrot.lane.b32.xlu0 %v167, 24
        %v941 = vpop.permute.xlu0 %940
        %942 = vrot.lane.b32.xlu0 %v169, 24
        %v943 = vpop.permute.xlu0 %942
        %944 = vrot.lane.b32.xlu0 %v170, 24
        %v945 = vpop.permute.xlu0 %944
        %946 = vrot.lane.b32.xlu0 %v172, 24
        %v947 = vpop.permute.xlu0 %946
        %948 = vrot.lane.b32.xlu0 %v173, 24
        %v949 = vpop.permute.xlu0 %948
        %950 = vrot.lane.b32.xlu0 %v175, 24
        %v951 = vpop.permute.xlu0 %950
        %952 = vrot.lane.b32.xlu0 %v176, 24
        %v953 = vpop.permute.xlu0 %952
        %954 = vrot.lane.b32.xlu0 %v178, 24
        %v955 = vpop.permute.xlu0 %954
        %956 = vrot.lane.b32.xlu0 %v179, 24
        %v957 = vpop.permute.xlu0 %956
        %958 = vrot.lane.b32.xlu0 %v181, 24
        %v959 = vpop.permute.xlu0 %958
        %960 = vrot.lane.b32.xlu0 %v182, 24
        %v961 = vpop.permute.xlu0 %960
        %962 = vrot.lane.b32.xlu0 %v184, 24
        %v963 = vpop.permute.xlu0 %962
        %964 = vrot.lane.b32.xlu0 %v185, 24
        %v965 = vpop.permute.xlu0 %964
        %966 = vrot.lane.b32.xlu0 %v187, 24
        %v967 = vpop.permute.xlu0 %966
        %968 = vrot.lane.b32.xlu0 %v188, 24
        %v969 = vpop.permute.xlu0 %968
        %1002 = vrot.lane.b32.xlu0 %v251, 28
        %v1003 = vpop.permute.xlu0 %1002
        %1004 = vrot.lane.b32.xlu0 %v253, 28
        %v1005 = vpop.permute.xlu0 %1004
        %1006 = vrot.lane.b32.xlu0 %v256, 28
        %v1007 = vpop.permute.xlu0 %1006
        %1008 = vrot.lane.b32.xlu0 %v258, 28
        %v1009 = vpop.permute.xlu0 %1008
        %1010 = vrot.lane.b32.xlu0 %v261, 28
        %v1011 = vpop.permute.xlu0 %1010
        %1012 = vrot.lane.b32.xlu0 %v263, 28
        %v1013 = vpop.permute.xlu0 %1012
        %1014 = vrot.lane.b32.xlu0 %v266, 28
        %v1015 = vpop.permute.xlu0 %1014
        %1016 = vrot.lane.b32.xlu0 %v268, 28
        %v1017 = vpop.permute.xlu0 %1016
        %1018 = vrot.lane.b32.xlu0 %v271, 28
        %v1019 = vpop.permute.xlu0 %1018
        %1020 = vrot.lane.b32.xlu0 %v273, 28
        %v1021 = vpop.permute.xlu0 %1020
        %1022 = vrot.lane.b32.xlu0 %v276, 28
        %v1023 = vpop.permute.xlu0 %1022
        %1024 = vrot.lane.b32.xlu0 %v278, 28
        %v1025 = vpop.permute.xlu0 %1024
        %1026 = vrot.lane.b32.xlu0 %v281, 28
        %v1027 = vpop.permute.xlu0 %1026
        %1028 = vrot.lane.b32.xlu0 %v283, 28
        %v1029 = vpop.permute.xlu0 %1028
        %1030 = vrot.lane.b32.xlu0 %v286, 28
        %v1031 = vpop.permute.xlu0 %1030
        %1032 = vrot.lane.b32.xlu0 %v288, 28
        %v1033 = vpop.permute.xlu0 %1032
        %1034 = vrot.lane.b32.xlu0 %v291, 28
        %v1035 = vpop.permute.xlu0 %1034
        %1036 = vrot.lane.b32.xlu0 %v293, 28
        %v1037 = vpop.permute.xlu0 %1036
        %1038 = vrot.lane.b32.xlu0 %v296, 28
        %v1039 = vpop.permute.xlu0 %1038
        %1040 = vrot.lane.b32.xlu0 %v298, 28
        %v1041 = vpop.permute.xlu0 %1040
        %1042 = vrot.lane.b32.xlu0 %v301, 28
        %v1043 = vpop.permute.xlu0 %1042
        %1044 = vrot.lane.b32.xlu0 %v303, 28
        %v1045 = vpop.permute.xlu0 %1044
        %1046 = vrot.lane.b32.xlu0 %v306, 28
        %v1047 = vpop.permute.xlu0 %1046
        %1048 = vrot.lane.b32.xlu0 %v308, 28
        %v1049 = vpop.permute.xlu0 %1048
        %1050 = vrot.lane.b32.xlu0 %v311, 28
        %v1051 = vpop.permute.xlu0 %1050
        %1052 = vrot.lane.b32.xlu0 %v313, 28
        %v1053 = vpop.permute.xlu0 %1052
        %1054 = vrot.lane.b32.xlu0 %v316, 28
        %v1055 = vpop.permute.xlu0 %1054
        %1056 = vrot.lane.b32.xlu0 %v318, 28
        %v1057 = vpop.permute.xlu0 %1056
        %1058 = vrot.lane.b32.xlu0 %v405, 28
        %v1059 = vpop.permute.xlu0 %1058
        %1060 = vrot.lane.b32.xlu0 %v407, 28
        %v1061 = vpop.permute.xlu0 %1060
        %1062 = vrot.lane.b32.xlu0 %v418, 28
        %v1063 = vpop.permute.xlu0 %1062
        %1064 = vrot.lane.b32.xlu0 %v420, 28
        %v1065 = vpop.permute.xlu0 %1064
        %1098 = vrot.lane.b32.xlu0 %v332, 32
        %v1099 = vpop.permute.xlu0 %1098
        %1100 = vrot.lane.b32.xlu0 %v334, 32
        %v1101 = vpop.permute.xlu0 %1100
        %1102 = vrot.lane.b32.xlu0 %v337, 32
        %v1103 = vpop.permute.xlu0 %1102
        %1104 = vrot.lane.b32.xlu0 %v339, 32
        %v1105 = vpop.permute.xlu0 %1104
        %1106 = vrot.lane.b32.xlu0 %v342, 32
        %v1107 = vpop.permute.xlu0 %1106
        %1108 = vrot.lane.b32.xlu0 %v344, 32
        %v1109 = vpop.permute.xlu0 %1108
        %1110 = vrot.lane.b32.xlu0 %v347, 32
        %v1111 = vpop.permute.xlu0 %1110
        %1112 = vrot.lane.b32.xlu0 %v349, 32
        %v1113 = vpop.permute.xlu0 %1112
        %1114 = vrot.lane.b32.xlu0 %v352, 32
        %v1115 = vpop.permute.xlu0 %1114
        %1116 = vrot.lane.b32.xlu0 %v354, 32
        %v1117 = vpop.permute.xlu0 %1116
        %1118 = vrot.lane.b32.xlu0 %v357, 32
        %v1119 = vpop.permute.xlu0 %1118
        %1120 = vrot.lane.b32.xlu0 %v359, 32
        %v1121 = vpop.permute.xlu0 %1120
        %1122 = vrot.lane.b32.xlu0 %v362, 32
        %v1123 = vpop.permute.xlu0 %1122
        %1124 = vrot.lane.b32.xlu0 %v364, 32
        %v1125 = vpop.permute.xlu0 %1124
        %1126 = vrot.lane.b32.xlu0 %v367, 32
        %v1127 = vpop.permute.xlu0 %1126
        %1128 = vrot.lane.b32.xlu0 %v369, 32
        %v1129 = vpop.permute.xlu0 %1128
        %1130 = vrot.lane.b32.xlu0 %v372, 32
        %v1131 = vpop.permute.xlu0 %1130
        %1132 = vrot.lane.b32.xlu0 %v374, 32
        %v1133 = vpop.permute.xlu0 %1132
        %1134 = vrot.lane.b32.xlu0 %v377, 32
        %v1135 = vpop.permute.xlu0 %1134
        %1136 = vrot.lane.b32.xlu0 %v379, 32
        %v1137 = vpop.permute.xlu0 %1136
        %1138 = vrot.lane.b32.xlu0 %v382, 32
        %v1139 = vpop.permute.xlu0 %1138
        %1140 = vrot.lane.b32.xlu0 %v384, 32
        %v1141 = vpop.permute.xlu0 %1140
        %1142 = vrot.lane.b32.xlu0 %v387, 32
        %v1143 = vpop.permute.xlu0 %1142
        %1144 = vrot.lane.b32.xlu0 %v389, 32
        %v1145 = vpop.permute.xlu0 %1144
        %1146 = vrot.lane.b32.xlu0 %v392, 32
        %v1147 = vpop.permute.xlu0 %1146
        %1148 = vrot.lane.b32.xlu0 %v394, 32
        %v1149 = vpop.permute.xlu0 %1148
        %1150 = vrot.lane.b32.xlu0 %v397, 32
        %v1151 = vpop.permute.xlu0 %1150
        %1152 = vrot.lane.b32.xlu0 %v399, 32
        %v1153 = vpop.permute.xlu0 %1152
        %1154 = vrot.lane.b32.xlu0 %v410, 32
        %v1155 = vpop.permute.xlu0 %1154
        %1156 = vrot.lane.b32.xlu0 %v412, 32
        %v1157 = vpop.permute.xlu0 %1156
        %1158 = vrot.lane.b32.xlu0 %v423, 32
        %v1159 = vpop.permute.xlu0 %1158
        %1160 = vrot.lane.b32.xlu0 %v425, 32
        %v1161 = vpop.permute.xlu0 %1160
        %vm1194 = vcmask 31744
        %v1195 = vsel %vm1194, %v136, %v427
        %v1196 = vsel %vm1194, %v137, %v429
        %v1197 = vsel %vm1194, %v139, %v431
        %v1198 = vsel %vm1194, %v140, %v433
        %v1199 = vsel %vm1194, %v142, %v435
        %v1200 = vsel %vm1194, %v143, %v437
        %v1201 = vsel %vm1194, %v145, %v439
        %v1202 = vsel %vm1194, %v146, %v441
        %v1203 = vsel %vm1194, %v148, %v443
        %v1204 = vsel %vm1194, %v149, %v445
        %v1205 = vsel %vm1194, %v151, %v447
        %v1206 = vsel %vm1194, %v152, %v449
        %v1207 = vsel %vm1194, %v154, %v451
        %v1208 = vsel %vm1194, %v155, %v453
        %v1209 = vsel %vm1194, %v157, %v455
        %v1210 = vsel %vm1194, %v158, %v457
        %v1211 = vsel %vm1194, %v160, %v459
        %v1212 = vsel %vm1194, %v161, %v461
        %v1213 = vsel %vm1194, %v163, %v463
        %v1214 = vsel %vm1194, %v164, %v465
        %v1215 = vsel %vm1194, %v166, %v467
        %v1216 = vsel %vm1194, %v167, %v469
        %v1217 = vsel %vm1194, %v169, %v471
        %v1218 = vsel %vm1194, %v170, %v473
        %v1219 = vsel %vm1194, %v172, %v475
        %v1220 = vsel %vm1194, %v173, %v477
        %v1221 = vsel %vm1194, %v175, %v479
        %v1222 = vsel %vm1194, %v176, %v481
        %v1223 = vsel %vm1194, %v178, %v483
        %v1224 = vsel %vm1194, %v179, %v485
        %v1225 = vsel %vm1194, %v181, %v487
        %v1226 = vsel %vm1194, %v182, %v489
        %vm1227 = vcmask 64512
        %v1228 = vsel %vm1227, %v1195, %v523
        %v1229 = vsel %vm1227, %v1196, %v525
        %v1230 = vsel %vm1227, %v1197, %v527
        %v1231 = vsel %vm1227, %v1198, %v529
        %v1232 = vsel %vm1227, %v1199, %v531
        %v1233 = vsel %vm1227, %v1200, %v533
        %v1234 = vsel %vm1227, %v1201, %v535
        %v1235 = vsel %vm1227, %v1202, %v537
        %v1236 = vsel %vm1227, %v1203, %v539
        %v1237 = vsel %vm1227, %v1204, %v541
        %v1238 = vsel %vm1227, %v1205, %v543
        %v1239 = vsel %vm1227, %v1206, %v545
        %v1240 = vsel %vm1227, %v1207, %v547
        %v1241 = vsel %vm1227, %v1208, %v549
        %v1242 = vsel %vm1227, %v1209, %v551
        %v1243 = vsel %vm1227, %v1210, %v553
        %v1244 = vsel %vm1227, %v1211, %v555
        %v1245 = vsel %vm1227, %v1212, %v557
        %v1246 = vsel %vm1227, %v1213, %v559
        %v1247 = vsel %vm1227, %v1214, %v561
        %v1248 = vsel %vm1227, %v1215, %v563
        %v1249 = vsel %vm1227, %v1216, %v565
        %v1250 = vsel %vm1227, %v1217, %v567
        %v1251 = vsel %vm1227, %v1218, %v569
        %v1252 = vsel %vm1227, %v1219, %v571
        %v1253 = vsel %vm1227, %v1220, %v573
        %v1254 = vsel %vm1227, %v1221, %v575
        %v1255 = vsel %vm1227, %v1222, %v577
        %v1256 = vsel %vm1227, %v1223, %v579
        %v1257 = vsel %vm1227, %v1224, %v581
        %v1258 = vsel %vm1227, %v1225, %v583
        %v1259 = vsel %vm1227, %v1226, %v585
        %vm1260 = vcmask 97280
        %v1261 = vsel %vm1260, %v1228, %v619
        %v1262 = vsel %vm1260, %v1229, %v621
        %v1263 = vsel %vm1260, %v1230, %v623
        %v1264 = vsel %vm1260, %v1231, %v625
        %v1265 = vsel %vm1260, %v1232, %v627
        %v1266 = vsel %vm1260, %v1233, %v629
        %v1267 = vsel %vm1260, %v1234, %v631
        %v1268 = vsel %vm1260, %v1235, %v633
        %v1269 = vsel %vm1260, %v1236, %v635
        %v1270 = vsel %vm1260, %v1237, %v637
        %v1271 = vsel %vm1260, %v1238, %v639
        %v1272 = vsel %vm1260, %v1239, %v641
        %v1273 = vsel %vm1260, %v1240, %v643
        %v1274 = vsel %vm1260, %v1241, %v645
        %v1275 = vsel %vm1260, %v1242, %v647
        %v1276 = vsel %vm1260, %v1243, %v649
        %v1277 = vsel %vm1260, %v1244, %v651
        %v1278 = vsel %vm1260, %v1245, %v653
        %v1279 = vsel %vm1260, %v1246, %v655
        %v1280 = vsel %vm1260, %v1247, %v657
        %v1281 = vsel %vm1260, %v1248, %v659
        %v1282 = vsel %vm1260, %v1249, %v661
        %v1283 = vsel %vm1260, %v1250, %v663
        %v1284 = vsel %vm1260, %v1251, %v665
        %v1285 = vsel %vm1260, %v1252, %v667
        %v1286 = vsel %vm1260, %v1253, %v669
        %v1287 = vsel %vm1260, %v1254, %v671
        %v1288 = vsel %vm1260, %v1255, %v673
        %v1289 = vsel %vm1260, %v1256, %v675
        %v1290 = vsel %vm1260, %v1257, %v677
        %v1291 = vsel %vm1260, %v1258, %v679
        %v1292 = vsel %vm1260, %v1259, %v681
        %vm1293 = vcmask 130048
        %v1294 = vsel %vm1293, %v1261, %v715
        %v1295 = vsel %vm1293, %v1262, %v717
        %v1296 = vsel %vm1293, %v1263, %v719
        %v1297 = vsel %vm1293, %v1264, %v721
        %v1298 = vsel %vm1293, %v1265, %v723
        %v1299 = vsel %vm1293, %v1266, %v725
        %v1300 = vsel %vm1293, %v1267, %v727
        %v1301 = vsel %vm1293, %v1268, %v729
        %v1302 = vsel %vm1293, %v1269, %v731
        %v1303 = vsel %vm1293, %v1270, %v733
        %v1304 = vsel %vm1293, %v1271, %v735
        %v1305 = vsel %vm1293, %v1272, %v737
        %v1306 = vsel %vm1293, %v1273, %v739
        %v1307 = vsel %vm1293, %v1274, %v741
        %v1308 = vsel %vm1293, %v1275, %v743
        %v1309 = vsel %vm1293, %v1276, %v745
        %v1310 = vsel %vm1293, %v1277, %v747
        %v1311 = vsel %vm1293, %v1278, %v749
        %v1312 = vsel %vm1293, %v1279, %v751
        %v1313 = vsel %vm1293, %v1280, %v753
        %v1314 = vsel %vm1293, %v1281, %v755
        %v1315 = vsel %vm1293, %v1282, %v757
        %v1316 = vsel %vm1293, %v1283, %v759
        %v1317 = vsel %vm1293, %v1284, %v761
        %v1318 = vsel %vm1293, %v1285, %v763
        %v1319 = vsel %vm1293, %v1286, %v765
        %v1320 = vsel %vm1293, %v1287, %v767
        %v1321 = vsel %vm1293, %v1288, %v769
        %v1322 = vsel %vm1293, %v1289, %v771
        %v1323 = vsel %vm1293, %v1290, %v773
        %v1324 = vsel %vm1293, %v1291, %v775
        %v1325 = vsel %vm1293, %v1292, %v777
        %vm1326 = vcmask 162816
        %v1327 = vsel %vm1326, %v1294, %v811
        %v1328 = vsel %vm1326, %v1295, %v813
        %v1329 = vsel %vm1326, %v1296, %v815
        %v1330 = vsel %vm1326, %v1297, %v817
        %v1331 = vsel %vm1326, %v1298, %v819
        %v1332 = vsel %vm1326, %v1299, %v821
        %v1333 = vsel %vm1326, %v1300, %v823
        %v1334 = vsel %vm1326, %v1301, %v825
        %v1335 = vsel %vm1326, %v1302, %v827
        %v1336 = vsel %vm1326, %v1303, %v829
        %v1337 = vsel %vm1326, %v1304, %v831
        %v1338 = vsel %vm1326, %v1305, %v833
        %v1339 = vsel %vm1326, %v1306, %v835
        %v1340 = vsel %vm1326, %v1307, %v837
        %v1341 = vsel %vm1326, %v1308, %v839
        %v1342 = vsel %vm1326, %v1309, %v841
        %v1343 = vsel %vm1326, %v1310, %v843
        %v1344 = vsel %vm1326, %v1311, %v845
        %v1345 = vsel %vm1326, %v1312, %v847
        %v1346 = vsel %vm1326, %v1313, %v849
        %v1347 = vsel %vm1326, %v1314, %v851
        %v1348 = vsel %vm1326, %v1315, %v853
        %v1349 = vsel %vm1326, %v1316, %v855
        %v1350 = vsel %vm1326, %v1317, %v857
        %v1351 = vsel %vm1326, %v1318, %v859
        %v1352 = vsel %vm1326, %v1319, %v861
        %v1353 = vsel %vm1326, %v1320, %v863
        %v1354 = vsel %vm1326, %v1321, %v865
        %v1355 = vsel %vm1326, %v1322, %v867
        %v1356 = vsel %vm1326, %v1323, %v869
        %v1357 = vsel %vm1326, %v1324, %v871
        %v1358 = vsel %vm1326, %v1325, %v873
        %vm1359 = vcmask 195584
        %v1360 = vsel %vm1359, %v1327, %v907
        %v1361 = vsel %vm1359, %v1328, %v909
        %v1362 = vsel %vm1359, %v1329, %v911
        %v1363 = vsel %vm1359, %v1330, %v913
        %v1364 = vsel %vm1359, %v1331, %v915
        %v1365 = vsel %vm1359, %v1332, %v917
        %v1366 = vsel %vm1359, %v1333, %v919
        %v1367 = vsel %vm1359, %v1334, %v921
        %v1368 = vsel %vm1359, %v1335, %v923
        %v1369 = vsel %vm1359, %v1336, %v925
        %v1370 = vsel %vm1359, %v1337, %v927
        %v1371 = vsel %vm1359, %v1338, %v929
        %v1372 = vsel %vm1359, %v1339, %v931
        %v1373 = vsel %vm1359, %v1340, %v933
        %v1374 = vsel %vm1359, %v1341, %v935
        %v1375 = vsel %vm1359, %v1342, %v937
        %v1376 = vsel %vm1359, %v1343, %v939
        %v1377 = vsel %vm1359, %v1344, %v941
        %v1378 = vsel %vm1359, %v1345, %v943
        %v1379 = vsel %vm1359, %v1346, %v945
        %v1380 = vsel %vm1359, %v1347, %v947
        %v1381 = vsel %vm1359, %v1348, %v949
        %v1382 = vsel %vm1359, %v1349, %v951
        %v1383 = vsel %vm1359, %v1350, %v953
        %v1384 = vsel %vm1359, %v1351, %v955
        %v1385 = vsel %vm1359, %v1352, %v957
        %v1386 = vsel %vm1359, %v1353, %v959
        %v1387 = vsel %vm1359, %v1354, %v961
        %v1388 = vsel %vm1359, %v1355, %v963
        %v1389 = vsel %vm1359, %v1356, %v965
        %v1390 = vsel %vm1359, %v1357, %v967
        %v1391 = vsel %vm1359, %v1358, %v969
        %vm1392 = vcmask 228352
        %v1393 = vsel %vm1392, %v1360, %v1003
        %v1394 = vsel %vm1392, %v1361, %v1005
        %v1395 = vsel %vm1392, %v1362, %v1007
        %v1396 = vsel %vm1392, %v1363, %v1009
        %v1397 = vsel %vm1392, %v1364, %v1011
        %v1398 = vsel %vm1392, %v1365, %v1013
        %v1399 = vsel %vm1392, %v1366, %v1015
        %v1400 = vsel %vm1392, %v1367, %v1017
        %v1401 = vsel %vm1392, %v1368, %v1019
        %v1402 = vsel %vm1392, %v1369, %v1021
        %v1403 = vsel %vm1392, %v1370, %v1023
        %v1404 = vsel %vm1392, %v1371, %v1025
        %v1405 = vsel %vm1392, %v1372, %v1027
        %v1406 = vsel %vm1392, %v1373, %v1029
        %v1407 = vsel %vm1392, %v1374, %v1031
        %v1408 = vsel %vm1392, %v1375, %v1033
        %v1409 = vsel %vm1392, %v1376, %v1035
        %v1410 = vsel %vm1392, %v1377, %v1037
        %v1411 = vsel %vm1392, %v1378, %v1039
        %v1412 = vsel %vm1392, %v1379, %v1041
        %v1413 = vsel %vm1392, %v1380, %v1043
        %v1414 = vsel %vm1392, %v1381, %v1045
        %v1415 = vsel %vm1392, %v1382, %v1047
        %v1416 = vsel %vm1392, %v1383, %v1049
        %v1417 = vsel %vm1392, %v1384, %v1051
        %v1418 = vsel %vm1392, %v1385, %v1053
        %v1419 = vsel %vm1392, %v1386, %v1055
        %v1420 = vsel %vm1392, %v1387, %v1057
        %v1421 = vsel %vm1392, %v1388, %v1059
        %v1422 = vsel %vm1392, %v1389, %v1061
        %v1423 = vsel %vm1392, %v1390, %v1063
        %v1424 = vsel %vm1392, %v1391, %v1065
        %vm1425 = vcmask 261120
        %v1426 = vsel %vm1425, %v1393, %v1099
        %v1427 = vsel %vm1425, %v1394, %v1101
        %v1428 = vsel %vm1425, %v1395, %v1103
        %v1429 = vsel %vm1425, %v1396, %v1105
        %v1430 = vsel %vm1425, %v1397, %v1107
        %v1431 = vsel %vm1425, %v1398, %v1109
        %v1432 = vsel %vm1425, %v1399, %v1111
        %v1433 = vsel %vm1425, %v1400, %v1113
        %v1434 = vsel %vm1425, %v1401, %v1115
        %v1435 = vsel %vm1425, %v1402, %v1117
        %v1436 = vsel %vm1425, %v1403, %v1119
        %v1437 = vsel %vm1425, %v1404, %v1121
        %v1438 = vsel %vm1425, %v1405, %v1123
        %v1439 = vsel %vm1425, %v1406, %v1125
        %v1440 = vsel %vm1425, %v1407, %v1127
        %v1441 = vsel %vm1425, %v1408, %v1129
        %v1442 = vsel %vm1425, %v1409, %v1131
        %v1443 = vsel %vm1425, %v1410, %v1133
        %v1444 = vsel %vm1425, %v1411, %v1135
        %v1445 = vsel %vm1425, %v1412, %v1137
        %v1446 = vsel %vm1425, %v1413, %v1139
        %v1447 = vsel %vm1425, %v1414, %v1141
        %v1448 = vsel %vm1425, %v1415, %v1143
        %v1449 = vsel %vm1425, %v1416, %v1145
        %v1450 = vsel %vm1425, %v1417, %v1147
        %v1451 = vsel %vm1425, %v1418, %v1149
        %v1452 = vsel %vm1425, %v1419, %v1151
        %v1453 = vsel %vm1425, %v1420, %v1153
        %v1454 = vsel %vm1425, %v1421, %v1155
        %v1455 = vsel %vm1425, %v1422, %v1157
        %v1456 = vsel %vm1425, %v1423, %v1159
        %v1457 = vsel %vm1425, %v1424, %v1161
        %v1458 = vld [vmem:[%s1] sm:$0xff]
        %v1459 = vld [vmem:[%s1 + $0x8] sm:$0xff]
        %v1460 = vld [vmem:[%s1 + $0x10] sm:$0xff]
        %v1461 = vld [vmem:[%s1 + $0x18] sm:$0xff]
        %v1462 = vld [vmem:[%s1 + $0x20] sm:$0xf]
        %vm1463 = vcmask 293888
        %v1465 = vsel %vm1463, %v1426, 0
        %v1468 = vsel %vm1463, %v1427, 0
        %v1471 = vsel %vm1463, %v1428, 0
        %v1474 = vsel %vm1463, %v1429, 0
        %v1477 = vsel %vm1463, %v1430, 0
        %v1480 = vsel %vm1463, %v1431, 0
        %v1483 = vsel %vm1463, %v1432, 0
        %v1486 = vsel %vm1463, %v1433, 0
        %v1489 = vsel %vm1463, %v1434, 0
        %v1492 = vsel %vm1463, %v1435, 0
        %v1495 = vsel %vm1463, %v1436, 0
        %v1498 = vsel %vm1463, %v1437, 0
        %v1501 = vsel %vm1463, %v1438, 0
        %v1504 = vsel %vm1463, %v1439, 0
        %v1507 = vsel %vm1463, %v1440, 0
        %v1510 = vsel %vm1463, %v1441, 0
        %v1513 = vsel %vm1463, %v1442, 0
        %v1516 = vsel %vm1463, %v1443, 0
        %v1519 = vsel %vm1463, %v1444, 0
        %v1522 = vsel %vm1463, %v1445, 0
        %v1525 = vsel %vm1463, %v1446, 0
        %v1528 = vsel %vm1463, %v1447, 0
        %v1531 = vsel %vm1463, %v1448, 0
        %v1534 = vsel %vm1463, %v1449, 0
        %v1537 = vsel %vm1463, %v1450, 0
        %v1540 = vsel %vm1463, %v1451, 0
        %v1543 = vsel %vm1463, %v1452, 0
        %v1546 = vsel %vm1463, %v1453, 0
        %v1549 = vsel %vm1463, %v1454, 0
        %v1552 = vsel %vm1463, %v1455, 0
        %v1555 = vsel %vm1463, %v1456, 0
        %v1558 = vsel %vm1463, %v1457, 0
        %vm1560 = vcmask 1043456
        %v1562 = vsel %vm1560, %v1462, 0
        %1564 = vmatprep.subr.mxu0 0.0
        %1565 = vmatpush1.msra.mxu0 %v1458
        %1566 = vmatprep.subr.mxu0 0.0
        %1567 = vmatpush1.msra.mxu0 %v1459
        %1568 = vmatprep.subr.mxu0 0.0
        %1569 = vmatpush1.msra.mxu0 %v1460
        %1570 = vmatprep.subr.mxu0 0.0
        %1571 = vmatpush1.msra.mxu0 %v1461
        %1572 = vmatprep.subr.mxu0 0.0
        %1573 = vmatpush1.msra.mxu0 %v1562
        %1574 = vmatprep.subr.mxu0 0.0
        %1575 = vmatpush1.msra.mxu0 0.0
        %1576 = vmatprep.subr.mxu0 0.0
        %1577 = vmatpush1.msra.mxu0 0.0
        %1578 = vmatprep.subr.mxu0 0.0
        %1579 = vmatpush1.msra.mxu0 0.0
        %1580 = vmatprep.subr.mxu0 0.0
        %1581 = vmatpush1.msra.mxu0 0.0
        %1582 = vmatprep.subr.mxu0 0.0
        %1583 = vmatpush1.msra.mxu0 0.0
        %1584 = vmatprep.subr.mxu0 0.0
        %1585 = vmatpush1.msra.mxu0 0.0
        %1586 = vmatprep.subr.mxu0 0.0
        %1587 = vmatpush1.msra.mxu0 0.0
        %1588 = vmatprep.subr.mxu0 0.0
        %1589 = vmatpush1.msra.mxu0 0.0
        %1590 = vmatprep.subr.mxu0 0.0
        %1591 = vmatpush1.msra.mxu0 0.0
        %1592 = vmatprep.subr.mxu0 0.0
        %1593 = vmatpush1.msra.mxu0 0.0
        %1594 = vmatprep.subr.mxu0 0.0
        %1595 = vmatpush1.msra.mxu0 0.0
        %1596 = vmatprep.subr.mxu0 0.0
        %1597 = vmatpush1.msra.mxu0 0.0
        %1598 = vmatprep.subr.mxu0 0.0
        %1599 = vmatpush1.msra.mxu0 0.0
        %1600 = vmatprep.subr.mxu0 0.0
        %1601 = vmatpush1.msra.mxu0 0.0
        %1602 = vmatprep.subr.mxu0 0.0
        %1603 = vmatpush1.msra.mxu0 0.0
        %1604 = vmatprep.subr.mxu0 0.0
        %1605 = vmatpush1.msra.mxu0 0.0
        %1606 = vmatprep.subr.mxu0 0.0
        %1607 = vmatpush1.msra.mxu0 0.0
        %1608 = vmatprep.subr.mxu0 0.0
        %1609 = vmatpush1.msra.mxu0 0.0
        %1610 = vmatprep.subr.mxu0 0.0
        %1611 = vmatpush1.msra.mxu0 0.0
        %1612 = vmatprep.subr.mxu0 0.0
        %1613 = vmatpush1.msra.mxu0 0.0
        %1614 = vmatprep.subr.mxu0 0.0
        %1615 = vmatpush1.msra.mxu0 0.0
        %1616 = vmatprep.subr.mxu0 0.0
        %1617 = vmatpush1.msra.mxu0 0.0
        %1618 = vmatprep.subr.mxu0 0.0
        %1619 = vmatpush1.msra.mxu0 0.0
        %1620 = vmatprep.subr.mxu0 0.0
        %1621 = vmatpush1.msra.mxu0 0.0
        %1622 = vmatprep.subr.mxu0 0.0
        %1623 = vmatpush1.msra.mxu0 0.0
        %1624 = vmatprep.subr.mxu0 0.0
        %1625 = vmatpush1.msra.mxu0 0.0
        %1626 = vmatprep.subr.mxu0 0.0
        %1627 = vmatpush1.msra.mxu0 0.0
        %1628 = vmatprep.mubr.f32.mxu0 0.0
        %1629 = vmatmul.mubr.f32.gmra.mrb[0].mxu0 %v1465
        %v1630 = vpop.f32.mrb[0].mxu0
        %v1631 = vadd.f32 0.0, %v1630
        %v1632 = vpop.f32.mrb[0].mxu0
        %1633 = vmatprep.mubr.f32.mxu0 0.0
        %1634 = vmatmul.mubr.f32.gmra.mrb[0].mxu0 %v1468
        %v1635 = vpop.f32.mrb[0].mxu0
        %v1636 = vadd.f32 0.0, %v1635
        %v1637 = vpop.f32.mrb[0].mxu0
        %1638 = vmatprep.mubr.f32.mxu0 0.0
        %1639 = vmatmul.mubr.f32.gmra.mrb[0].mxu0 %v1471
        %v1640 = vpop.f32.mrb[0].mxu0
        %v1641 = vadd.f32 0.0, %v1640
        %v1642 = vpop.f32.mrb[0].mxu0
        %1643 = vmatprep.mubr.f32.mxu0 0.0
        %1644 = vmatmul.mubr.f32.gmra.mrb[0].mxu0 %v1474
        %v1645 = vpop.f32.mrb[0].mxu0
        %v1646 = vadd.f32 0.0, %v1645
        %v1647 = vpop.f32.mrb[0].mxu0
        %1648 = vmatprep.mubr.f32.mxu0 0.0
        %1649 = vmatmul.mubr.f32.gmra.mrb[0].mxu0 %v1477
        %v1650 = vpop.f32.mrb[0].mxu0
        %v1651 = vadd.f32 0.0, %v1650
        %v1652 = vpop.f32.mrb[0].mxu0
        %1653 = vmatprep.mubr.f32.mxu0 0.0
        %1654 = vmatmul.mubr.f32.gmra.mrb[0].mxu0 %v1480
        %v1655 = vpop.f32.mrb[0].mxu0
        %v1656 = vadd.f32 0.0, %v1655
        %v1657 = vpop.f32.mrb[0].mxu0
        %1658 = vmatprep.mubr.f32.mxu0 0.0
        %1659 = vmatmul.mubr.f32.gmra.mrb[0].mxu0 %v1483
        %v1660 = vpop.f32.mrb[0].mxu0
        %v1661 = vadd.f32 0.0, %v1660
        %v1662 = vpop.f32.mrb[0].mxu0
        %1663 = vmatprep.mubr.f32.mxu0 0.0
        %1664 = vmatmul.mubr.f32.gmra.mrb[0].mxu0 %v1486
        %v1665 = vpop.f32.mrb[0].mxu0
        %v1666 = vadd.f32 0.0, %v1665
        %v1667 = vpop.f32.mrb[0].mxu0
        %1668 = vmatprep.mubr.f32.mxu0 0.0
        %1669 = vmatmul.mubr.f32.gmra.mrb[0].mxu0 %v1489
        %v1670 = vpop.f32.mrb[0].mxu0
        %v1671 = vadd.f32 0.0, %v1670
        %v1672 = vpop.f32.mrb[0].mxu0
        %1673 = vmatprep.mubr.f32.mxu0 0.0
        %1674 = vmatmul.mubr.f32.gmra.mrb[0].mxu0 %v1492
        %v1675 = vpop.f32.mrb[0].mxu0
        %v1676 = vadd.f32 0.0, %v1675
        %v1677 = vpop.f32.mrb[0].mxu0
        %1678 = vmatprep.mubr.f32.mxu0 0.0
        %1679 = vmatmul.mubr.f32.gmra.mrb[0].mxu0 %v1495
        %v1680 = vpop.f32.mrb[0].mxu0
        %v1681 = vadd.f32 0.0, %v1680
        %v1682 = vpop.f32.mrb[0].mxu0
        %1683 = vmatprep.mubr.f32.mxu0 0.0
        %1684 = vmatmul.mubr.f32.gmra.mrb[0].mxu0 %v1498
        %v1685 = vpop.f32.mrb[0].mxu0
        %v1686 = vadd.f32 0.0, %v1685
        %v1687 = vpop.f32.mrb[0].mxu0
        %1688 = vmatprep.mubr.f32.mxu0 0.0
        %1689 = vmatmul.mubr.f32.gmra.mrb[0].mxu0 %v1501
        %v1690 = vpop.f32.mrb[0].mxu0
        %v1691 = vadd.f32 0.0, %v1690
        %v1692 = vpop.f32.mrb[0].mxu0
        %1693 = vmatprep.mubr.f32.mxu0 0.0
        %1694 = vmatmul.mubr.f32.gmra.mrb[0].mxu0 %v1504
        %v1695 = vpop.f32.mrb[0].mxu0
        %v1696 = vadd.f32 0.0, %v1695
        %v1697 = vpop.f32.mrb[0].mxu0
        %1698 = vmatprep.mubr.f32.mxu0 0.0
        %1699 = vmatmul.mubr.f32.gmra.mrb[0].mxu0 %v1507
        %v1700 = vpop.f32.mrb[0].mxu0
        %v1701 = vadd.f32 0.0, %v1700
        %v1702 = vpop.f32.mrb[0].mxu0
        %1703 = vmatprep.mubr.f32.mxu0 0.0
        %1704 = vmatmul.mubr.f32.gmra.mrb[0].mxu0 %v1510
        %v1705 = vpop.f32.mrb[0].mxu0
        %v1706 = vadd.f32 0.0, %v1705
        %v1707 = vpop.f32.mrb[0].mxu0
        %1708 = vmatprep.mubr.f32.mxu0 0.0
        %1709 = vmatmul.mubr.f32.gmra.mrb[0].mxu0 %v1513
        %v1710 = vpop.f32.mrb[0].mxu0
        %v1711 = vadd.f32 0.0, %v1710
        %v1712 = vpop.f32.mrb[0].mxu0
        %1713 = vmatprep.mubr.f32.mxu0 0.0
        %1714 = vmatmul.mubr.f32.gmra.mrb[0].mxu0 %v1516
        %v1715 = vpop.f32.mrb[0].mxu0
        %v1716 = vadd.f32 0.0, %v1715
        %v1717 = vpop.f32.mrb[0].mxu0
        %1718 = vmatprep.mubr.f32.mxu0 0.0
        %1719 = vmatmul.mubr.f32.gmra.mrb[0].mxu0 %v1519
        %v1720 = vpop.f32.mrb[0].mxu0
        %v1721 = vadd.f32 0.0, %v1720
        %v1722 = vpop.f32.mrb[0].mxu0
        %1723 = vmatprep.mubr.f32.mxu0 0.0
        %1724 = vmatmul.mubr.f32.gmra.mrb[0].mxu0 %v1522
        %v1725 = vpop.f32.mrb[0].mxu0
        %v1726 = vadd.f32 0.0, %v1725
        %v1727 = vpop.f32.mrb[0].mxu0
        %1728 = vmatprep.mubr.f32.mxu0 0.0
        %1729 = vmatmul.mubr.f32.gmra.mrb[0].mxu0 %v1525
        %v1730 = vpop.f32.mrb[0].mxu0
        %v1731 = vadd.f32 0.0, %v1730
        %v1732 = vpop.f32.mrb[0].mxu0
        %1733 = vmatprep.mubr.f32.mxu0 0.0
        %1734 = vmatmul.mubr.f32.gmra.mrb[0].mxu0 %v1528
        %v1735 = vpop.f32.mrb[0].mxu0
        %v1736 = vadd.f32 0.0, %v1735
        %v1737 = vpop.f32.mrb[0].mxu0
        %1738 = vmatprep.mubr.f32.mxu0 0.0
        %1739 = vmatmul.mubr.f32.gmra.mrb[0].mxu0 %v1531
        %v1740 = vpop.f32.mrb[0].mxu0
        %v1741 = vadd.f32 0.0, %v1740
        %v1742 = vpop.f32.mrb[0].mxu0
        %1743 = vmatprep.mubr.f32.mxu0 0.0
        %1744 = vmatmul.mubr.f32.gmra.mrb[0].mxu0 %v1534
        %v1745 = vpop.f32.mrb[0].mxu0
        %v1746 = vadd.f32 0.0, %v1745
        %v1747 = vpop.f32.mrb[0].mxu0
        %1748 = vmatprep.mubr.f32.mxu0 0.0
        %1749 = vmatmul.mubr.f32.gmra.mrb[0].mxu0 %v1537
        %v1750 = vpop.f32.mrb[0].mxu0
        %v1751 = vadd.f32 0.0, %v1750
        %v1752 = vpop.f32.mrb[0].mxu0
        %1753 = vmatprep.mubr.f32.mxu0 0.0
        %1754 = vmatmul.mubr.f32.gmra.mrb[0].mxu0 %v1540
        %v1755 = vpop.f32.mrb[0].mxu0
        %v1756 = vadd.f32 0.0, %v1755
        %v1757 = vpop.f32.mrb[0].mxu0
        %1758 = vmatprep.mubr.f32.mxu0 0.0
        %1759 = vmatmul.mubr.f32.gmra.mrb[0].mxu0 %v1543
        %v1760 = vpop.f32.mrb[0].mxu0
        %v1761 = vadd.f32 0.0, %v1760
        %v1762 = vpop.f32.mrb[0].mxu0
        %1763 = vmatprep.mubr.f32.mxu0 0.0
        %1764 = vmatmul.mubr.f32.gmra.mrb[0].mxu0 %v1546
        %v1765 = vpop.f32.mrb[0].mxu0
        %v1766 = vadd.f32 0.0, %v1765
        %v1767 = vpop.f32.mrb[0].mxu0
        %1768 = vmatprep.mubr.f32.mxu0 0.0
        %1769 = vmatmul.mubr.f32.gmra.mrb[0].mxu0 %v1549
        %v1770 = vpop.f32.mrb[0].mxu0
        %v1771 = vadd.f32 0.0, %v1770
        %v1772 = vpop.f32.mrb[0].mxu0
        %1773 = vmatprep.mubr.f32.mxu0 0.0
        %1774 = vmatmul.mubr.f32.gmra.mrb[0].mxu0 %v1552
        %v1775 = vpop.f32.mrb[0].mxu0
        %v1776 = vadd.f32 0.0, %v1775
        %v1777 = vpop.f32.mrb[0].mxu0
        %1778 = vmatprep.mubr.f32.mxu0 0.0
        %1779 = vmatmul.mubr.f32.gmra.mrb[0].mxu0 %v1555
        %v1780 = vpop.f32.mrb[0].mxu0
        %v1781 = vadd.f32 0.0, %v1780
        %v1782 = vpop.f32.mrb[0].mxu0
        %1783 = vmatprep.mubr.f32.mxu0 0.0
        %1784 = vmatmul.mubr.f32.gmra.mrb[0].mxu0 %v1558
        %v1785 = vpop.f32.mrb[0].mxu0
        %v1786 = vadd.f32 0.0, %v1785
        %v1787 = vpop.f32.mrb[0].mxu0
        %1788 = vdwg.mxu0
        %v1789 = vsel %vm1227, %v1631, 0.0
        %v1790 = vsel %vm1227, %v1636, 0.0
        %v1791 = vadd.f32 %v1789, %v1790
        %v1792 = vsel %vm1227, %v1641, 0.0
        %v1793 = vadd.f32 %v1791, %v1792
        %v1794 = vsel %vm1227, %v1646, 0.0
        %v1795 = vadd.f32 %v1793, %v1794
        %v1796 = vsel %vm1227, %v1651, 0.0
        %v1797 = vadd.f32 %v1795, %v1796
        %v1798 = vsel %vm1227, %v1656, 0.0
        %v1799 = vadd.f32 %v1797, %v1798
        %v1800 = vsel %vm1227, %v1661, 0.0
        %v1801 = vadd.f32 %v1799, %v1800
        %v1802 = vsel %vm1227, %v1666, 0.0
        %v1803 = vadd.f32 %v1801, %v1802
        %v1804 = vsel %vm1227, %v1671, 0.0
        %v1805 = vadd.f32 %v1803, %v1804
        %v1806 = vsel %vm1227, %v1676, 0.0
        %v1807 = vadd.f32 %v1805, %v1806
        %v1808 = vsel %vm1227, %v1681, 0.0
        %v1809 = vadd.f32 %v1807, %v1808
        %v1810 = vsel %vm1227, %v1686, 0.0
        %v1811 = vadd.f32 %v1809, %v1810
        %v1812 = vsel %vm1227, %v1691, 0.0
        %v1813 = vadd.f32 %v1811, %v1812
        %v1814 = vsel %vm1227, %v1696, 0.0
        %v1815 = vadd.f32 %v1813, %v1814
        %v1816 = vsel %vm1227, %v1701, 0.0
        %v1817 = vadd.f32 %v1815, %v1816
        %v1818 = vsel %vm1227, %v1706, 0.0
        %v1819 = vadd.f32 %v1817, %v1818
        %v1820 = vsel %vm1227, %v1711, 0.0
        %v1821 = vadd.f32 %v1819, %v1820
        %v1822 = vsel %vm1227, %v1716, 0.0
        %v1823 = vadd.f32 %v1821, %v1822
        %v1824 = vsel %vm1227, %v1721, 0.0
        %v1825 = vadd.f32 %v1823, %v1824
        %v1826 = vsel %vm1227, %v1726, 0.0
        %v1827 = vadd.f32 %v1825, %v1826
        %v1828 = vsel %vm1227, %v1731, 0.0
        %v1829 = vadd.f32 %v1827, %v1828
        %v1830 = vsel %vm1227, %v1736, 0.0
        %v1831 = vadd.f32 %v1829, %v1830
        %v1832 = vsel %vm1227, %v1741, 0.0
        %v1833 = vadd.f32 %v1831, %v1832
        %v1834 = vsel %vm1227, %v1746, 0.0
        %v1835 = vadd.f32 %v1833, %v1834
        %v1836 = vsel %vm1227, %v1751, 0.0
        %v1837 = vadd.f32 %v1835, %v1836
        %v1838 = vsel %vm1227, %v1756, 0.0
        %v1839 = vadd.f32 %v1837, %v1838
        %v1840 = vsel %vm1227, %v1761, 0.0
        %v1841 = vadd.f32 %v1839, %v1840
        %v1842 = vsel %vm1227, %v1766, 0.0
        %v1843 = vadd.f32 %v1841, %v1842
        %v1844 = vsel %vm1227, %v1771, 0.0
        %v1845 = vadd.f32 %v1843, %v1844
        %v1846 = vsel %vm1227, %v1776, 0.0
        %v1847 = vadd.f32 %v1845, %v1846
        %v1848 = vsel %vm1227, %v1781, 0.0
        %v1849 = vadd.f32 %v1847, %v1848
        %v1850 = vsel %vm1227, %v1786, 0.0
        %v1851 = vadd.f32 %v1849, %v1850
        %v1852 = vrot.slane %v1851, 4
        %v1853 = vadd.f32 %v1851, %v1852
        %v1854 = vrot.slane %v1853, 2
        %v1855 = vadd.f32 %v1853, %v1854
        %v1856 = vrot.slane %v1855, 1
        %v1857 = vadd.f32 %v1855, %v1856
        %v1858 = vmul.f32 %v1631, %v1631
        %v1859 = vmul.f32 %v1636, %v1636
        %v1860 = vmul.f32 %v1641, %v1641
        %v1861 = vmul.f32 %v1646, %v1646
        %v1862 = vmul.f32 %v1651, %v1651
        %v1863 = vmul.f32 %v1656, %v1656
        %v1864 = vmul.f32 %v1661, %v1661
        %v1865 = vmul.f32 %v1666, %v1666
        %v1866 = vmul.f32 %v1671, %v1671
        %v1867 = vmul.f32 %v1676, %v1676
        %v1868 = vmul.f32 %v1681, %v1681
        %v1869 = vmul.f32 %v1686, %v1686
        %v1870 = vmul.f32 %v1691, %v1691
        %v1871 = vmul.f32 %v1696, %v1696
        %v1872 = vmul.f32 %v1701, %v1701
        %v1873 = vmul.f32 %v1706, %v1706
        %v1874 = vmul.f32 %v1711, %v1711
        %v1875 = vmul.f32 %v1716, %v1716
        %v1876 = vmul.f32 %v1721, %v1721
        %v1877 = vmul.f32 %v1726, %v1726
        %v1878 = vmul.f32 %v1731, %v1731
        %v1879 = vmul.f32 %v1736, %v1736
        %v1880 = vmul.f32 %v1741, %v1741
        %v1881 = vmul.f32 %v1746, %v1746
        %v1882 = vmul.f32 %v1751, %v1751
        %v1883 = vmul.f32 %v1756, %v1756
        %v1884 = vmul.f32 %v1761, %v1761
        %v1885 = vmul.f32 %v1766, %v1766
        %v1886 = vmul.f32 %v1771, %v1771
        %v1887 = vmul.f32 %v1776, %v1776
        %v1888 = vmul.f32 %v1781, %v1781
        %v1889 = vmul.f32 %v1786, %v1786
        %v1890 = vsel %vm1227, %v1858, 0.0
        %v1891 = vsel %vm1227, %v1859, 0.0
        %v1892 = vadd.f32 %v1890, %v1891
        %v1893 = vsel %vm1227, %v1860, 0.0
        %v1894 = vadd.f32 %v1892, %v1893
        %v1895 = vsel %vm1227, %v1861, 0.0
        %v1896 = vadd.f32 %v1894, %v1895
        %v1897 = vsel %vm1227, %v1862, 0.0
        %v1898 = vadd.f32 %v1896, %v1897
        %v1899 = vsel %vm1227, %v1863, 0.0
        %v1900 = vadd.f32 %v1898, %v1899
        %v1901 = vsel %vm1227, %v1864, 0.0
        %v1902 = vadd.f32 %v1900, %v1901
        %v1903 = vsel %vm1227, %v1865, 0.0
        %v1904 = vadd.f32 %v1902, %v1903
        %v1905 = vsel %vm1227, %v1866, 0.0
        %v1906 = vadd.f32 %v1904, %v1905
        %v1907 = vsel %vm1227, %v1867, 0.0
        %v1908 = vadd.f32 %v1906, %v1907
        %v1909 = vsel %vm1227, %v1868, 0.0
        %v1910 = vadd.f32 %v1908, %v1909
        %v1911 = vsel %vm1227, %v1869, 0.0
        %v1912 = vadd.f32 %v1910, %v1911
        %v1913 = vsel %vm1227, %v1870, 0.0
        %v1914 = vadd.f32 %v1912, %v1913
        %v1915 = vsel %vm1227, %v1871, 0.0
        %v1916 = vadd.f32 %v1914, %v1915
        %v1917 = vsel %vm1227, %v1872, 0.0
        %v1918 = vadd.f32 %v1916, %v1917
        %v1919 = vsel %vm1227, %v1873, 0.0
        %v1920 = vadd.f32 %v1918, %v1919
        %v1921 = vsel %vm1227, %v1874, 0.0
        %v1922 = vadd.f32 %v1920, %v1921
        %v1923 = vsel %vm1227, %v1875, 0.0
        %v1924 = vadd.f32 %v1922, %v1923
        %v1925 = vsel %vm1227, %v1876, 0.0
        %v1926 = vadd.f32 %v1924, %v1925
        %v1927 = vsel %vm1227, %v1877, 0.0
        %v1928 = vadd.f32 %v1926, %v1927
        %v1929 = vsel %vm1227, %v1878, 0.0
        %v1930 = vadd.f32 %v1928, %v1929
        %v1931 = vsel %vm1227, %v1879, 0.0
        %v1932 = vadd.f32 %v1930, %v1931
        %v1933 = vsel %vm1227, %v1880, 0.0
        %v1934 = vadd.f32 %v1932, %v1933
        %v1935 = vsel %vm1227, %v1881, 0.0
        %v1936 = vadd.f32 %v1934, %v1935
        %v1937 = vsel %vm1227, %v1882, 0.0
        %v1938 = vadd.f32 %v1936, %v1937
        %v1939 = vsel %vm1227, %v1883, 0.0
        %v1940 = vadd.f32 %v1938, %v1939
        %v1941 = vsel %vm1227, %v1884, 0.0
        %v1942 = vadd.f32 %v1940, %v1941
        %v1943 = vsel %vm1227, %v1885, 0.0
        %v1944 = vadd.f32 %v1942, %v1943
        %v1945 = vsel %vm1227, %v1886, 0.0
        %v1946 = vadd.f32 %v1944, %v1945
        %v1947 = vsel %vm1227, %v1887, 0.0
        %v1948 = vadd.f32 %v1946, %v1947
        %v1949 = vsel %vm1227, %v1888, 0.0
        %v1950 = vadd.f32 %v1948, %v1949
        %v1951 = vsel %vm1227, %v1889, 0.0
        %v1952 = vadd.f32 %v1950, %v1951
        %v1953 = vrot.slane %v1952, 4
        %v1954 = vadd.f32 %v1952, %v1953
        %v1955 = vrot.slane %v1954, 2
        %v1956 = vadd.f32 %v1954, %v1955
        %v1957 = vrot.slane %v1956, 1
        %v1958 = vadd.f32 %v1956, %v1957
        %v1959 = vld [vmem:[#allocation2] sm:$0x3]
        %vm1960 = vcmask 1040384
        %v1961 = vsel %vm1960, %v1857, %v1958
        %v1962 = vadd.f32 %v1959, %v1961
        %vm1963 = vcmask 58368
        %1964 = vst.msk [vmem:[#allocation2] sm:$0x3] %vm1963, %v1962
        // Predicated region
        $region33: #{tpu_custom_call.1} parent=27 // pred_check
          %p1965 = pneg %p74
        $region34: #{tpu_custom_call.1} parent=27 // pred_check_branch
          %1967 = sbr.rel (%p1965) target = $region36
        $region35: #{tpu_custom_call.1} parent=27 // pred_region
          %s1969 = ssub.s32 32, 32
          %1970 = vsyncadd [#allocation3], %s1969
          %s1972 = sshll.u32 [#allocation2], 4
          %s1973 = int_to_ptr.vmem [resolvable:$true] %s1972
          %1975 = dma.vmem_to_hbm [thread:$0]  %s1973, 32, %s2, [#allocation3]
        $region36: #{tpu_custom_call.1} parent=27 // pred_fallthru
          _
        // Predicated region
        $region37: #{tpu_custom_call.1} parent=27 // pred_check
          %p1976 = pneg %p74
        $region38: #{tpu_custom_call.1} parent=27 // pred_check_branch
          %1978 = sbr.rel (%p1976) target = $region40
        $region39: #{tpu_custom_call.1} parent=27 // pred_region
          %1979 = dma.done [#allocation3], 32
        $region40: #{tpu_custom_call.1} parent=27 // pred_fallthru
          _
      $region28: #{tpu_custom_call.1} parent=5 // pred_fallthru
        _
      %p1980 = scmp.le.s32.totalorder 2, %s9
      // Predicated region
      $region41: #{tpu_custom_call.1} parent=5 // pred_check
        %p1981 = pneg %p1980
      $region42: #{tpu_custom_call.1} parent=5 // pred_check_branch
        %1983 = sbr.rel (%p1981) target = $region44
      $region43: #{tpu_custom_call.1} parent=5 // pred_region
        %s1984 = ssub.s32 %s9, 2
      $region44: #{tpu_custom_call.1} parent=5 // pred_fallthru
        _
    $region6: #{tpu_custom_call.1} parent=1 // loop_footer
      %s13 = sadd.s32 1, %s9
    $region7: #{tpu_custom_call.1} parent=1 // loop_footer_branch
      %8 = sbr.rel target = $region3
    $region8: #{tpu_custom_call.1} parent=1 // loop_exit
      _
    %1985 = vsyncpa [#allocation3], 1
    %s1986 = scalar_lea.sflag [#allocation3], 1
    %1987 = vsyncpa %s1986, 1

</llo_original>
